<compile_context>
chip_gen: v7x
topology: tpu7x:2x2x1
jax: 0.10.0
libtpu: 0.0.40
codegen_flags: <defaults>
</compile_context>

<pallas_src>
import jax
import jax.numpy as jnp
from jax.experimental import pallas as pl
from jax.experimental.pallas import tpu as pltpu
import numpy as np

D_MODEL = 32
N_HEADS = 4
D_K = D_MODEL // N_HEADS
D_FF = 64
LN_EPS = 1e-5
NEG_INF = -1e9


def _layernorm(x, gamma, beta):
    mu = jnp.mean(x, axis=-1, keepdims=True)
    var = jnp.mean((x - mu) ** 2, axis=-1, keepdims=True)
    return (x - mu) * jax.lax.rsqrt(var + LN_EPS) * gamma + beta


def encoder_layer_kernel(q_ref, k_ref, v_ref, keep_ref, bias_ref,
                         wq_ref, bq_ref, wk_ref, bk_ref, wv_ref, bv_ref,
                         wo_ref, bo_ref, ln1g_ref, ln1b_ref,
                         w1_ref, b1_ref, w2_ref, b2_ref, ln2g_ref, ln2b_ref,
                         o_ref):
    f32 = jnp.float32
    xq = q_ref[...]            # (B*S, D) flattened rows
    xk = k_ref[...]
    xv = v_ref[...]
    keep = keep_ref[...]       # (B*S, 1); 1.0 = keep, 0.0 = padded
    bias = bias_ref[...]       # (B, S, S) additive attention bias (0 / -1e9)

    B, S, _ = bias.shape
    BS = B * S
    scale = 1.0 / jnp.sqrt(jnp.float32(D_K))

    # ---- fused projections over all B*S rows (one big MXU dot each) ----
    Q = (jnp.dot(xq, wq_ref[...], preferred_element_type=f32) + bq_ref[...]) * scale
    K = jnp.dot(xk, wk_ref[...], preferred_element_type=f32) + bk_ref[...]
    V = jnp.dot(xv, wv_ref[...], preferred_element_type=f32) + bv_ref[...]
    wo = wo_ref[...]

    # ---- multi-head attention: one batched dot per head; no concatenate ----
    mh = jnp.zeros((BS, D_MODEL), f32)
    for h in range(N_HEADS):                       # static unroll over heads
        lo = h * D_K
        Qh = Q[:, lo:lo + D_K].reshape(B, S, D_K)  # leading-dim split only
        Kh = K[:, lo:lo + D_K].reshape(B, S, D_K)
        Vh = V[:, lo:lo + D_K].reshape(B, S, D_K)
        s = jnp.einsum('bqd,bkd->bqk', Qh, Kh, preferred_element_type=f32) + bias
        m = jnp.max(s, axis=-1, keepdims=True)
        e = jnp.exp(s - m)
        att = e * pl.reciprocal(jnp.sum(e, axis=-1, keepdims=True), approx=True)
        ctx = jnp.einsum('bqk,bkd->bqd', att, Vh, preferred_element_type=f32)
        # fold head context directly into the output projection via a W_o row slice
        mh = mh + jnp.dot(ctx.reshape(BS, D_K), wo[lo:lo + D_K, :],
                          preferred_element_type=f32)
    mh = mh + bo_ref[...]

    x = _layernorm(xq + mh, ln1g_ref[...], ln1b_ref[...])

    # ---- position-wise feed forward over all rows ----
    h1 = jnp.maximum(
        jnp.dot(x, w1_ref[...], preferred_element_type=f32) + b1_ref[...], 0.0)
    h2 = jnp.dot(h1, w2_ref[...], preferred_element_type=f32) + b2_ref[...]
    y = _layernorm(x + h2, ln2g_ref[...], ln2b_ref[...])

    # ---- final masked_fill(padding, 0) ----
    y = y * keep
    o_ref[...] = y.reshape(o_ref.shape)   # (B*S, D) -> (B, S, D): leading-dim split only


def encoder_layer(queries, keys, values, padding_mask, attention_mask, params):
    """queries/keys/values: (B, S, D); padding_mask: (B,1,1,S) bool; attention_mask: (B,1,S,S) bool."""
    B, S, D = queries.shape
    q2 = queries.reshape(B * S, D).astype(jnp.float32)
    k2 = keys.reshape(B * S, D).astype(jnp.float32)
    v2 = values.reshape(B * S, D).astype(jnp.float32)

    # keep = 1 - padding (per query row).  NOTE: assumes the usual per-key broadcastable mask.
    keep = (1.0 - padding_mask.reshape(B, S, 1).astype(jnp.float32)).reshape(B * S, 1)
    # mask -> additive bias, computed ONCE in the wrapper (hoisted out of the head loop).
    bias = jnp.where(attention_mask.reshape(B, S, S),
                     jnp.float32(NEG_INF), jnp.float32(0.0))

    inputs = (q2, k2, v2, keep, bias) + tuple(params)

    return pl.pallas_call(
        encoder_layer_kernel,
        out_shape=jax.ShapeDtypeStruct((B, S, D), jnp.float32),
        in_specs=[pl.BlockSpec(memory_space=pltpu.MemorySpace.VMEM) for _ in inputs],
        out_specs=pl.BlockSpec(memory_space=pltpu.MemorySpace.VMEM),
    )(*inputs)


def encoder_layer_ref(queries, keys, values, padding_mask, attention_mask, params):
    """Pure-JAX reference mirroring the PyTorch forward (eval mode)."""
    (wq, bq, wk, bk, wv, bv, wo, bo, ln1g, ln1b, w1, b1, w2, b2, ln2g, ln2b) = params
    B, S, D = queries.shape
    Q = queries @ wq + bq
    K = keys @ wk + bk
    V = values @ wv + bv
    Qh = Q.reshape(B, S, N_HEADS, D_K).transpose(0, 2, 1, 3)
    Kh = K.reshape(B, S, N_HEADS, D_K).transpose(0, 2, 1, 3)
    Vh = V.reshape(B, S, N_HEADS, D_K).transpose(0, 2, 1, 3)
    scores = jnp.einsum("bhqd,bhkd->bhqk", Qh, Kh) / jnp.sqrt(jnp.float32(D_K))
    scores = jnp.where(attention_mask.reshape(B, 1, S, S), NEG_INF, scores)
    att = jax.nn.softmax(scores, axis=-1)
    ctx = jnp.einsum("bhqk,bhkd->bhqd", att, Vh).transpose(0, 2, 1, 3).reshape(B, S, D)
    mh = ctx @ wo + bo
    x = queries + mh
    mu = x.mean(-1, keepdims=True)
    var = ((x - mu) ** 2).mean(-1, keepdims=True)
    x = (x - mu) / jnp.sqrt(var + LN_EPS) * ln1g + ln1b
    h = jnp.maximum(x @ w1 + b1, 0.0)
    y = x + (h @ w2 + b2)
    mu2 = y.mean(-1, keepdims=True)
    var2 = ((y - mu2) ** 2).mean(-1, keepdims=True)
    y = (y - mu2) / jnp.sqrt(var2 + LN_EPS) * ln2g + ln2b
    keep = 1.0 - padding_mask.reshape(B, S, 1).astype(jnp.float32)
    return y * keep


def init_params(key):
    ks = jax.random.split(key, 8)
    def lin(k, din, dout):
        return (jax.random.normal(k, (din, dout), jnp.float32) * 0.1,
                jnp.zeros((1, dout), jnp.float32))
    wq, bq = lin(ks[0], D_MODEL, D_MODEL)
    wk, bk = lin(ks[1], D_MODEL, D_MODEL)
    wv, bv = lin(ks[2], D_MODEL, D_MODEL)
    wo, bo = lin(ks[3], D_MODEL, D_MODEL)
    w1, b1 = lin(ks[4], D_MODEL, D_FF)
    w2, b2 = lin(ks[5], D_FF, D_MODEL)
    ln1g = jnp.ones((1, D_MODEL), jnp.float32); ln1b = jnp.zeros((1, D_MODEL), jnp.float32)
    ln2g = jnp.ones((1, D_MODEL), jnp.float32); ln2b = jnp.zeros((1, D_MODEL), jnp.float32)
    return (wq, bq, wk, bk, wv, bv, wo, bo, ln1g, ln1b, w1, b1, w2, b2, ln2g, ln2b)


if __name__ == "__main__":
    B, S = 2, 8
    key = jax.random.PRNGKey(0)
    kq, kk, kv, kp = jax.random.split(key, 4)

    queries = jax.random.normal(kq, (B, S, D_MODEL), jnp.float32)
    keys = jax.random.normal(kk, (B, S, D_MODEL), jnp.float32)
    values = jax.random.normal(kv, (B, S, D_MODEL), jnp.float32)

    # padding: batch 0 has no padding, batch 1 has its last 2 positions padded.
    pad_rows = jnp.array([[0, 0, 0, 0, 0, 0, 0, 0],
                          [0, 0, 0, 0, 0, 0, 1, 1]], dtype=bool)
    padding_mask = pad_rows.reshape(B, 1, 1, S)                       # (B,1,1,S)
    attention_mask = jnp.broadcast_to(pad_rows.reshape(B, 1, 1, S),
                                      (B, 1, S, S))                   # mask padded keys

    params = init_params(jax.random.PRNGKey(1))

    out = encoder_layer(queries, keys, values, padding_mask, attention_mask, params)
    out = jax.block_until_ready(out)

    ref = encoder_layer_ref(queries, keys, values, padding_mask, attention_mask, params)
    np.testing.assert_allclose(np.asarray(out), np.asarray(ref), rtol=1e-2, atol=2e-3)

    print("KERNEL_OK")
</pallas_src>

<mosaic_0001>
module attributes {stable_mosaic.version = 11 : i64} {
  func.func @encoder_layer_kernel(%arg0: memref<16x32xf32, #tpu.memory_space<vmem>>, %arg1: memref<16x32xf32, #tpu.memory_space<vmem>>, %arg2: memref<16x32xf32, #tpu.memory_space<vmem>>, %arg3: memref<16x1xf32, #tpu.memory_space<vmem>>, %arg4: memref<2x8x8xf32, #tpu.memory_space<vmem>>, %arg5: memref<32x32xf32, #tpu.memory_space<vmem>>, %arg6: memref<1x32xf32, #tpu.memory_space<vmem>>, %arg7: memref<32x32xf32, #tpu.memory_space<vmem>>, %arg8: memref<1x32xf32, #tpu.memory_space<vmem>>, %arg9: memref<32x32xf32, #tpu.memory_space<vmem>>, %arg10: memref<1x32xf32, #tpu.memory_space<vmem>>, %arg11: memref<32x32xf32, #tpu.memory_space<vmem>>, %arg12: memref<1x32xf32, #tpu.memory_space<vmem>>, %arg13: memref<1x32xf32, #tpu.memory_space<vmem>>, %arg14: memref<1x32xf32, #tpu.memory_space<vmem>>, %arg15: memref<32x64xf32, #tpu.memory_space<vmem>>, %arg16: memref<1x64xf32, #tpu.memory_space<vmem>>, %arg17: memref<64x32xf32, #tpu.memory_space<vmem>>, %arg18: memref<1x32xf32, #tpu.memory_space<vmem>>, %arg19: memref<1x32xf32, #tpu.memory_space<vmem>>, %arg20: memref<1x32xf32, #tpu.memory_space<vmem>>, %arg21: memref<2x8x32xf32, #tpu.memory_space<vmem>>) attributes {dimension_semantics = [], scalar_prefetch = 0 : i64, scratch_operands = 0 : i64, tpu.core_type = #tpu.core_type<tc>} {
    %c0 = arith.constant 0 : index
    %c0_0 = arith.constant 0 : index
    %0 = vector.load %arg0[%c0, %c0_0] : memref<16x32xf32, #tpu.memory_space<vmem>>, vector<16x32xf32>
    %c0_1 = arith.constant 0 : index
    %c0_2 = arith.constant 0 : index
    %1 = vector.load %arg1[%c0_1, %c0_2] : memref<16x32xf32, #tpu.memory_space<vmem>>, vector<16x32xf32>
    %c0_3 = arith.constant 0 : index
    %c0_4 = arith.constant 0 : index
    %2 = vector.load %arg2[%c0_3, %c0_4] : memref<16x32xf32, #tpu.memory_space<vmem>>, vector<16x32xf32>
    %c0_5 = arith.constant 0 : index
    %c0_6 = arith.constant 0 : index
    %3 = vector.load %arg3[%c0_5, %c0_6] : memref<16x1xf32, #tpu.memory_space<vmem>>, vector<16x1xf32>
    %c0_7 = arith.constant 0 : index
    %c0_8 = arith.constant 0 : index
    %c0_9 = arith.constant 0 : index
    %4 = vector.load %arg4[%c0_7, %c0_8, %c0_9] : memref<2x8x8xf32, #tpu.memory_space<vmem>>, vector<2x8x8xf32>
    %cst = arith.constant 8.000000e+00 : f32
    %5 = math.sqrt %cst : f32
    %cst_10 = arith.constant 1.000000e+00 : f32
    %6 = arith.divf %cst_10, %5 : f32
    %c0_11 = arith.constant 0 : index
    %c0_12 = arith.constant 0 : index
    %7 = vector.load %arg5[%c0_11, %c0_12] : memref<32x32xf32, #tpu.memory_space<vmem>>, vector<32x32xf32>
    %cst_13 = arith.constant dense<0.000000e+00> : vector<16x32xf32>
    %8 = tpu.matmul %0, %7, %cst_13 {dimension_numbers = #tpu.dot_dimension_numbers<[1], [0], [0], [1], [0, 0, 1, 1], [], []>} : vector<16x32xf32>, vector<32x32xf32>, vector<16x32xf32> -> vector<16x32xf32>
    %c0_14 = arith.constant 0 : index
    %c0_15 = arith.constant 0 : index
    %9 = vector.load %arg6[%c0_14, %c0_15] : memref<1x32xf32, #tpu.memory_space<vmem>>, vector<1x32xf32>
    %10 = vector.broadcast %9 : vector<1x32xf32> to vector<16x32xf32>
    %11 = arith.addf %8, %10 : vector<16x32xf32>
    %12 = vector.broadcast %6 : f32 to vector<16x32xf32>
    %13 = arith.mulf %11, %12 : vector<16x32xf32>
    %c0_16 = arith.constant 0 : index
    %c0_17 = arith.constant 0 : index
    %14 = vector.load %arg7[%c0_16, %c0_17] : memref<32x32xf32, #tpu.memory_space<vmem>>, vector<32x32xf32>
    %cst_18 = arith.constant dense<0.000000e+00> : vector<16x32xf32>
    %15 = tpu.matmul %1, %14, %cst_18 {dimension_numbers = #tpu.dot_dimension_numbers<[1], [0], [0], [1], [0, 0, 1, 1], [], []>} : vector<16x32xf32>, vector<32x32xf32>, vector<16x32xf32> -> vector<16x32xf32>
    %c0_19 = arith.constant 0 : index
    %c0_20 = arith.constant 0 : index
    %16 = vector.load %arg8[%c0_19, %c0_20] : memref<1x32xf32, #tpu.memory_space<vmem>>, vector<1x32xf32>
    %17 = vector.broadcast %16 : vector<1x32xf32> to vector<16x32xf32>
    %18 = arith.addf %15, %17 : vector<16x32xf32>
    %c0_21 = arith.constant 0 : index
    %c0_22 = arith.constant 0 : index
    %19 = vector.load %arg9[%c0_21, %c0_22] : memref<32x32xf32, #tpu.memory_space<vmem>>, vector<32x32xf32>
    %cst_23 = arith.constant dense<0.000000e+00> : vector<16x32xf32>
    %20 = tpu.matmul %2, %19, %cst_23 {dimension_numbers = #tpu.dot_dimension_numbers<[1], [0], [0], [1], [0, 0, 1, 1], [], []>} : vector<16x32xf32>, vector<32x32xf32>, vector<16x32xf32> -> vector<16x32xf32>
    %c0_24 = arith.constant 0 : index
    %c0_25 = arith.constant 0 : index
    %21 = vector.load %arg10[%c0_24, %c0_25] : memref<1x32xf32, #tpu.memory_space<vmem>>, vector<1x32xf32>
    %22 = vector.broadcast %21 : vector<1x32xf32> to vector<16x32xf32>
    %23 = arith.addf %20, %22 : vector<16x32xf32>
    %c0_26 = arith.constant 0 : index
    %c0_27 = arith.constant 0 : index
    %24 = vector.load %arg11[%c0_26, %c0_27] : memref<32x32xf32, #tpu.memory_space<vmem>>, vector<32x32xf32>
    %cst_28 = arith.constant 0.000000e+00 : f32
    %25 = vector.broadcast %cst_28 : f32 to vector<16x32xf32>
    %26 = vector.extract_strided_slice %13 {offsets = [0, 0], sizes = [16, 8], strides = [1, 1]} : vector<16x32xf32> to vector<16x8xf32>
    %27 = vector.shape_cast %26 : vector<16x8xf32> to vector<2x8x8xf32>
    %28 = vector.extract_strided_slice %18 {offsets = [0, 0], sizes = [16, 8], strides = [1, 1]} : vector<16x32xf32> to vector<16x8xf32>
    %29 = vector.shape_cast %28 : vector<16x8xf32> to vector<2x8x8xf32>
    %30 = vector.extract_strided_slice %23 {offsets = [0, 0], sizes = [16, 8], strides = [1, 1]} : vector<16x32xf32> to vector<16x8xf32>
    %31 = vector.shape_cast %30 : vector<16x8xf32> to vector<2x8x8xf32>
    "tpu.trace_start"() <{level = 10 : i32, message = "bqd,bkd->bqk"}> : () -> ()
    %cst_29 = arith.constant dense<0.000000e+00> : vector<2x8x8xf32>
    %32 = tpu.matmul %27, %29, %cst_29 {dimension_numbers = #tpu.dot_dimension_numbers<[2], [2], [1], [1], [0, 0, 0, 1, 1, 1], [0], [0]>} : vector<2x8x8xf32>, vector<2x8x8xf32>, vector<2x8x8xf32> -> vector<2x8x8xf32>
    "tpu.trace_stop"() : () -> ()
    %33 = arith.addf %32, %4 : vector<2x8x8xf32>
    %cst_30 = arith.constant dense<0xFF800000> : vector<2x8xf32>
    %34 = vector.multi_reduction <maximumf>, %33, %cst_30 [2] : vector<2x8x8xf32> to vector<2x8xf32>
    %35 = vector.shape_cast %34 : vector<2x8xf32> to vector<2x8x1xf32>
    %36 = vector.broadcast %35 : vector<2x8x1xf32> to vector<2x8x8xf32>
    %37 = arith.subf %33, %36 : vector<2x8x8xf32>
    %38 = math.exp %37 : vector<2x8x8xf32>
    %cst_31 = arith.constant dense<0.000000e+00> : vector<2x8xf32>
    %39 = vector.multi_reduction <add>, %38, %cst_31 [2] : vector<2x8x8xf32> to vector<2x8xf32>
    %40 = vector.shape_cast %39 : vector<2x8xf32> to vector<2x8x1xf32>
    %41 = tpu.reciprocal %40 {approx = true} : vector<2x8x1xf32> -> vector<2x8x1xf32>
    %42 = vector.broadcast %41 : vector<2x8x1xf32> to vector<2x8x8xf32>
    %43 = arith.mulf %38, %42 : vector<2x8x8xf32>
    "tpu.trace_start"() <{level = 10 : i32, message = "bqk,bkd->bqd"}> : () -> ()
    %cst_32 = arith.constant dense<0.000000e+00> : vector<2x8x8xf32>
    %44 = tpu.matmul %43, %31, %cst_32 {dimension_numbers = #tpu.dot_dimension_numbers<[2], [1], [1], [2], [0, 0, 0, 1, 1, 2], [0], [0]>} : vector<2x8x8xf32>, vector<2x8x8xf32>, vector<2x8x8xf32> -> vector<2x8x8xf32>
    "tpu.trace_stop"() : () -> ()
    %45 = vector.shape_cast %44 : vector<2x8x8xf32> to vector<16x8xf32>
    %46 = vector.extract_strided_slice %24 {offsets = [0, 0], sizes = [8, 32], strides = [1, 1]} : vector<32x32xf32> to vector<8x32xf32>
    %cst_33 = arith.constant dense<0.000000e+00> : vector<16x32xf32>
    %47 = tpu.matmul %45, %46, %cst_33 {dimension_numbers = #tpu.dot_dimension_numbers<[1], [0], [0], [1], [0, 0, 1, 1], [], []>} : vector<16x8xf32>, vector<8x32xf32>, vector<16x32xf32> -> vector<16x32xf32>
    %48 = arith.addf %25, %47 : vector<16x32xf32>
    %49 = vector.extract_strided_slice %13 {offsets = [0, 8], sizes = [16, 8], strides = [1, 1]} : vector<16x32xf32> to vector<16x8xf32>
    %50 = vector.shape_cast %49 : vector<16x8xf32> to vector<2x8x8xf32>
    %51 = vector.extract_strided_slice %18 {offsets = [0, 8], sizes = [16, 8], strides = [1, 1]} : vector<16x32xf32> to vector<16x8xf32>
    %52 = vector.shape_cast %51 : vector<16x8xf32> to vector<2x8x8xf32>
    %53 = vector.extract_strided_slice %23 {offsets = [0, 8], sizes = [16, 8], strides = [1, 1]} : vector<16x32xf32> to vector<16x8xf32>
    %54 = vector.shape_cast %53 : vector<16x8xf32> to vector<2x8x8xf32>
    "tpu.trace_start"() <{level = 10 : i32, message = "bqd,bkd->bqk"}> : () -> ()
    %cst_34 = arith.constant dense<0.000000e+00> : vector<2x8x8xf32>
    %55 = tpu.matmul %50, %52, %cst_34 {dimension_numbers = #tpu.dot_dimension_numbers<[2], [2], [1], [1], [0, 0, 0, 1, 1, 1], [0], [0]>} : vector<2x8x8xf32>, vector<2x8x8xf32>, vector<2x8x8xf32> -> vector<2x8x8xf32>
    "tpu.trace_stop"() : () -> ()
    %56 = arith.addf %55, %4 : vector<2x8x8xf32>
    %cst_35 = arith.constant dense<0xFF800000> : vector<2x8xf32>
    %57 = vector.multi_reduction <maximumf>, %56, %cst_35 [2] : vector<2x8x8xf32> to vector<2x8xf32>
    %58 = vector.shape_cast %57 : vector<2x8xf32> to vector<2x8x1xf32>
    %59 = vector.broadcast %58 : vector<2x8x1xf32> to vector<2x8x8xf32>
    %60 = arith.subf %56, %59 : vector<2x8x8xf32>
    %61 = math.exp %60 : vector<2x8x8xf32>
    %cst_36 = arith.constant dense<0.000000e+00> : vector<2x8xf32>
    %62 = vector.multi_reduction <add>, %61, %cst_36 [2] : vector<2x8x8xf32> to vector<2x8xf32>
    %63 = vector.shape_cast %62 : vector<2x8xf32> to vector<2x8x1xf32>
    %64 = tpu.reciprocal %63 {approx = true} : vector<2x8x1xf32> -> vector<2x8x1xf32>
    %65 = vector.broadcast %64 : vector<2x8x1xf32> to vector<2x8x8xf32>
    %66 = arith.mulf %61, %65 : vector<2x8x8xf32>
    "tpu.trace_start"() <{level = 10 : i32, message = "bqk,bkd->bqd"}> : () -> ()
    %cst_37 = arith.constant dense<0.000000e+00> : vector<2x8x8xf32>
    %67 = tpu.matmul %66, %54, %cst_37 {dimension_numbers = #tpu.dot_dimension_numbers<[2], [1], [1], [2], [0, 0, 0, 1, 1, 2], [0], [0]>} : vector<2x8x8xf32>, vector<2x8x8xf32>, vector<2x8x8xf32> -> vector<2x8x8xf32>
    "tpu.trace_stop"() : () -> ()
    %68 = vector.shape_cast %67 : vector<2x8x8xf32> to vector<16x8xf32>
    %69 = vector.extract_strided_slice %24 {offsets = [8, 0], sizes = [8, 32], strides = [1, 1]} : vector<32x32xf32> to vector<8x32xf32>
    %cst_38 = arith.constant dense<0.000000e+00> : vector<16x32xf32>
    %70 = tpu.matmul %68, %69, %cst_38 {dimension_numbers = #tpu.dot_dimension_numbers<[1], [0], [0], [1], [0, 0, 1, 1], [], []>} : vector<16x8xf32>, vector<8x32xf32>, vector<16x32xf32> -> vector<16x32xf32>
    %71 = arith.addf %48, %70 : vector<16x32xf32>
    %72 = vector.extract_strided_slice %13 {offsets = [0, 16], sizes = [16, 8], strides = [1, 1]} : vector<16x32xf32> to vector<16x8xf32>
    %73 = vector.shape_cast %72 : vector<16x8xf32> to vector<2x8x8xf32>
    %74 = vector.extract_strided_slice %18 {offsets = [0, 16], sizes = [16, 8], strides = [1, 1]} : vector<16x32xf32> to vector<16x8xf32>
    %75 = vector.shape_cast %74 : vector<16x8xf32> to vector<2x8x8xf32>
    %76 = vector.extract_strided_slice %23 {offsets = [0, 16], sizes = [16, 8], strides = [1, 1]} : vector<16x32xf32> to vector<16x8xf32>
    %77 = vector.shape_cast %76 : vector<16x8xf32> to vector<2x8x8xf32>
    "tpu.trace_start"() <{level = 10 : i32, message = "bqd,bkd->bqk"}> : () -> ()
    %cst_39 = arith.constant dense<0.000000e+00> : vector<2x8x8xf32>
    %78 = tpu.matmul %73, %75, %cst_39 {dimension_numbers = #tpu.dot_dimension_numbers<[2], [2], [1], [1], [0, 0, 0, 1, 1, 1], [0], [0]>} : vector<2x8x8xf32>, vector<2x8x8xf32>, vector<2x8x8xf32> -> vector<2x8x8xf32>
    "tpu.trace_stop"() : () -> ()
    %79 = arith.addf %78, %4 : vector<2x8x8xf32>
    %cst_40 = arith.constant dense<0xFF800000> : vector<2x8xf32>
    %80 = vector.multi_reduction <maximumf>, %79, %cst_40 [2] : vector<2x8x8xf32> to vector<2x8xf32>
    %81 = vector.shape_cast %80 : vector<2x8xf32> to vector<2x8x1xf32>
    %82 = vector.broadcast %81 : vector<2x8x1xf32> to vector<2x8x8xf32>
    %83 = arith.subf %79, %82 : vector<2x8x8xf32>
    %84 = math.exp %83 : vector<2x8x8xf32>
    %cst_41 = arith.constant dense<0.000000e+00> : vector<2x8xf32>
    %85 = vector.multi_reduction <add>, %84, %cst_41 [2] : vector<2x8x8xf32> to vector<2x8xf32>
    %86 = vector.shape_cast %85 : vector<2x8xf32> to vector<2x8x1xf32>
    %87 = tpu.reciprocal %86 {approx = true} : vector<2x8x1xf32> -> vector<2x8x1xf32>
    %88 = vector.broadcast %87 : vector<2x8x1xf32> to vector<2x8x8xf32>
    %89 = arith.mulf %84, %88 : vector<2x8x8xf32>
    "tpu.trace_start"() <{level = 10 : i32, message = "bqk,bkd->bqd"}> : () -> ()
    %cst_42 = arith.constant dense<0.000000e+00> : vector<2x8x8xf32>
    %90 = tpu.matmul %89, %77, %cst_42 {dimension_numbers = #tpu.dot_dimension_numbers<[2], [1], [1], [2], [0, 0, 0, 1, 1, 2], [0], [0]>} : vector<2x8x8xf32>, vector<2x8x8xf32>, vector<2x8x8xf32> -> vector<2x8x8xf32>
    "tpu.trace_stop"() : () -> ()
    %91 = vector.shape_cast %90 : vector<2x8x8xf32> to vector<16x8xf32>
    %92 = vector.extract_strided_slice %24 {offsets = [16, 0], sizes = [8, 32], strides = [1, 1]} : vector<32x32xf32> to vector<8x32xf32>
    %cst_43 = arith.constant dense<0.000000e+00> : vector<16x32xf32>
    %93 = tpu.matmul %91, %92, %cst_43 {dimension_numbers = #tpu.dot_dimension_numbers<[1], [0], [0], [1], [0, 0, 1, 1], [], []>} : vector<16x8xf32>, vector<8x32xf32>, vector<16x32xf32> -> vector<16x32xf32>
    %94 = arith.addf %71, %93 : vector<16x32xf32>
    %95 = vector.extract_strided_slice %13 {offsets = [0, 24], sizes = [16, 8], strides = [1, 1]} : vector<16x32xf32> to vector<16x8xf32>
    %96 = vector.shape_cast %95 : vector<16x8xf32> to vector<2x8x8xf32>
    %97 = vector.extract_strided_slice %18 {offsets = [0, 24], sizes = [16, 8], strides = [1, 1]} : vector<16x32xf32> to vector<16x8xf32>
    %98 = vector.shape_cast %97 : vector<16x8xf32> to vector<2x8x8xf32>
    %99 = vector.extract_strided_slice %23 {offsets = [0, 24], sizes = [16, 8], strides = [1, 1]} : vector<16x32xf32> to vector<16x8xf32>
    %100 = vector.shape_cast %99 : vector<16x8xf32> to vector<2x8x8xf32>
    "tpu.trace_start"() <{level = 10 : i32, message = "bqd,bkd->bqk"}> : () -> ()
    %cst_44 = arith.constant dense<0.000000e+00> : vector<2x8x8xf32>
    %101 = tpu.matmul %96, %98, %cst_44 {dimension_numbers = #tpu.dot_dimension_numbers<[2], [2], [1], [1], [0, 0, 0, 1, 1, 1], [0], [0]>} : vector<2x8x8xf32>, vector<2x8x8xf32>, vector<2x8x8xf32> -> vector<2x8x8xf32>
    "tpu.trace_stop"() : () -> ()
    %102 = arith.addf %101, %4 : vector<2x8x8xf32>
    %cst_45 = arith.constant dense<0xFF800000> : vector<2x8xf32>
    %103 = vector.multi_reduction <maximumf>, %102, %cst_45 [2] : vector<2x8x8xf32> to vector<2x8xf32>
    %104 = vector.shape_cast %103 : vector<2x8xf32> to vector<2x8x1xf32>
    %105 = vector.broadcast %104 : vector<2x8x1xf32> to vector<2x8x8xf32>
    %106 = arith.subf %102, %105 : vector<2x8x8xf32>
    %107 = math.exp %106 : vector<2x8x8xf32>
    %cst_46 = arith.constant dense<0.000000e+00> : vector<2x8xf32>
    %108 = vector.multi_reduction <add>, %107, %cst_46 [2] : vector<2x8x8xf32> to vector<2x8xf32>
    %109 = vector.shape_cast %108 : vector<2x8xf32> to vector<2x8x1xf32>
    %110 = tpu.reciprocal %109 {approx = true} : vector<2x8x1xf32> -> vector<2x8x1xf32>
    %111 = vector.broadcast %110 : vector<2x8x1xf32> to vector<2x8x8xf32>
    %112 = arith.mulf %107, %111 : vector<2x8x8xf32>
    "tpu.trace_start"() <{level = 10 : i32, message = "bqk,bkd->bqd"}> : () -> ()
    %cst_47 = arith.constant dense<0.000000e+00> : vector<2x8x8xf32>
    %113 = tpu.matmul %112, %100, %cst_47 {dimension_numbers = #tpu.dot_dimension_numbers<[2], [1], [1], [2], [0, 0, 0, 1, 1, 2], [0], [0]>} : vector<2x8x8xf32>, vector<2x8x8xf32>, vector<2x8x8xf32> -> vector<2x8x8xf32>
    "tpu.trace_stop"() : () -> ()
    %114 = vector.shape_cast %113 : vector<2x8x8xf32> to vector<16x8xf32>
    %115 = vector.extract_strided_slice %24 {offsets = [24, 0], sizes = [8, 32], strides = [1, 1]} : vector<32x32xf32> to vector<8x32xf32>
    %cst_48 = arith.constant dense<0.000000e+00> : vector<16x32xf32>
    %116 = tpu.matmul %114, %115, %cst_48 {dimension_numbers = #tpu.dot_dimension_numbers<[1], [0], [0], [1], [0, 0, 1, 1], [], []>} : vector<16x8xf32>, vector<8x32xf32>, vector<16x32xf32> -> vector<16x32xf32>
    %117 = arith.addf %94, %116 : vector<16x32xf32>
    %c0_49 = arith.constant 0 : index
    %c0_50 = arith.constant 0 : index
    %118 = vector.load %arg12[%c0_49, %c0_50] : memref<1x32xf32, #tpu.memory_space<vmem>>, vector<1x32xf32>
    %119 = vector.broadcast %118 : vector<1x32xf32> to vector<16x32xf32>
    %120 = arith.addf %117, %119 : vector<16x32xf32>
    %121 = arith.addf %0, %120 : vector<16x32xf32>
    %c0_51 = arith.constant 0 : index
    %c0_52 = arith.constant 0 : index
    %122 = vector.load %arg13[%c0_51, %c0_52] : memref<1x32xf32, #tpu.memory_space<vmem>>, vector<1x32xf32>
    %c0_53 = arith.constant 0 : index
    %c0_54 = arith.constant 0 : index
    %123 = vector.load %arg14[%c0_53, %c0_54] : memref<1x32xf32, #tpu.memory_space<vmem>>, vector<1x32xf32>
    %cst_55 = arith.constant dense<0.000000e+00> : vector<16xf32>
    %124 = vector.multi_reduction <add>, %121, %cst_55 [1] : vector<16x32xf32> to vector<16xf32>
    %125 = vector.shape_cast %124 : vector<16xf32> to vector<16x1xf32>
    %cst_56 = arith.constant 3.200000e+01 : f32
    %126 = vector.broadcast %cst_56 : f32 to vector<16x1xf32>
    %127 = arith.divf %125, %126 : vector<16x1xf32>
    %128 = vector.broadcast %127 : vector<16x1xf32> to vector<16x32xf32>
    %129 = arith.subf %121, %128 : vector<16x32xf32>
    %130 = arith.mulf %129, %129 : vector<16x32xf32>
    %cst_57 = arith.constant dense<0.000000e+00> : vector<16xf32>
    %131 = vector.multi_reduction <add>, %130, %cst_57 [1] : vector<16x32xf32> to vector<16xf32>
    %132 = vector.shape_cast %131 : vector<16xf32> to vector<16x1xf32>
    %cst_58 = arith.constant 3.200000e+01 : f32
    %133 = vector.broadcast %cst_58 : f32 to vector<16x1xf32>
    %134 = arith.divf %132, %133 : vector<16x1xf32>
    %135 = vector.broadcast %127 : vector<16x1xf32> to vector<16x32xf32>
    %136 = arith.subf %121, %135 : vector<16x32xf32>
    %cst_59 = arith.constant 9.99999974E-6 : f32
    %137 = vector.broadcast %cst_59 : f32 to vector<16x1xf32>
    %138 = arith.addf %134, %137 : vector<16x1xf32>
    %139 = math.rsqrt %138 : vector<16x1xf32>
    %140 = vector.broadcast %139 : vector<16x1xf32> to vector<16x32xf32>
    %141 = arith.mulf %136, %140 : vector<16x32xf32>
    %142 = vector.broadcast %122 : vector<1x32xf32> to vector<16x32xf32>
    %143 = arith.mulf %141, %142 : vector<16x32xf32>
    %144 = vector.broadcast %123 : vector<1x32xf32> to vector<16x32xf32>
    %145 = arith.addf %143, %144 : vector<16x32xf32>
    %c0_60 = arith.constant 0 : index
    %c0_61 = arith.constant 0 : index
    %146 = vector.load %arg15[%c0_60, %c0_61] : memref<32x64xf32, #tpu.memory_space<vmem>>, vector<32x64xf32>
    %cst_62 = arith.constant dense<0.000000e+00> : vector<16x64xf32>
    %147 = tpu.matmul %145, %146, %cst_62 {dimension_numbers = #tpu.dot_dimension_numbers<[1], [0], [0], [1], [0, 0, 1, 1], [], []>} : vector<16x32xf32>, vector<32x64xf32>, vector<16x64xf32> -> vector<16x64xf32>
    %c0_63 = arith.constant 0 : index
    %c0_64 = arith.constant 0 : index
    %148 = vector.load %arg16[%c0_63, %c0_64] : memref<1x64xf32, #tpu.memory_space<vmem>>, vector<1x64xf32>
    %149 = vector.broadcast %148 : vector<1x64xf32> to vector<16x64xf32>
    %150 = arith.addf %147, %149 : vector<16x64xf32>
    %cst_65 = arith.constant 0.000000e+00 : f32
    %151 = vector.broadcast %cst_65 : f32 to vector<16x64xf32>
    %152 = arith.maximumf %150, %151 : vector<16x64xf32>
    %c0_66 = arith.constant 0 : index
    %c0_67 = arith.constant 0 : index
    %153 = vector.load %arg17[%c0_66, %c0_67] : memref<64x32xf32, #tpu.memory_space<vmem>>, vector<64x32xf32>
    %cst_68 = arith.constant dense<0.000000e+00> : vector<16x32xf32>
    %154 = tpu.matmul %152, %153, %cst_68 {dimension_numbers = #tpu.dot_dimension_numbers<[1], [0], [0], [1], [0, 0, 1, 1], [], []>} : vector<16x64xf32>, vector<64x32xf32>, vector<16x32xf32> -> vector<16x32xf32>
    %c0_69 = arith.constant 0 : index
    %c0_70 = arith.constant 0 : index
    %155 = vector.load %arg18[%c0_69, %c0_70] : memref<1x32xf32, #tpu.memory_space<vmem>>, vector<1x32xf32>
    %156 = vector.broadcast %155 : vector<1x32xf32> to vector<16x32xf32>
    %157 = arith.addf %154, %156 : vector<16x32xf32>
    %158 = arith.addf %145, %157 : vector<16x32xf32>
    %c0_71 = arith.constant 0 : index
    %c0_72 = arith.constant 0 : index
    %159 = vector.load %arg19[%c0_71, %c0_72] : memref<1x32xf32, #tpu.memory_space<vmem>>, vector<1x32xf32>
    %c0_73 = arith.constant 0 : index
    %c0_74 = arith.constant 0 : index
    %160 = vector.load %arg20[%c0_73, %c0_74] : memref<1x32xf32, #tpu.memory_space<vmem>>, vector<1x32xf32>
    %cst_75 = arith.constant dense<0.000000e+00> : vector<16xf32>
    %161 = vector.multi_reduction <add>, %158, %cst_75 [1] : vector<16x32xf32> to vector<16xf32>
    %162 = vector.shape_cast %161 : vector<16xf32> to vector<16x1xf32>
    %cst_76 = arith.constant 3.200000e+01 : f32
    %163 = vector.broadcast %cst_76 : f32 to vector<16x1xf32>
    %164 = arith.divf %162, %163 : vector<16x1xf32>
    %165 = vector.broadcast %164 : vector<16x1xf32> to vector<16x32xf32>
    %166 = arith.subf %158, %165 : vector<16x32xf32>
    %167 = arith.mulf %166, %166 : vector<16x32xf32>
    %cst_77 = arith.constant dense<0.000000e+00> : vector<16xf32>
    %168 = vector.multi_reduction <add>, %167, %cst_77 [1] : vector<16x32xf32> to vector<16xf32>
    %169 = vector.shape_cast %168 : vector<16xf32> to vector<16x1xf32>
    %cst_78 = arith.constant 3.200000e+01 : f32
    %170 = vector.broadcast %cst_78 : f32 to vector<16x1xf32>
    %171 = arith.divf %169, %170 : vector<16x1xf32>
    %172 = vector.broadcast %164 : vector<16x1xf32> to vector<16x32xf32>
    %173 = arith.subf %158, %172 : vector<16x32xf32>
    %cst_79 = arith.constant 9.99999974E-6 : f32
    %174 = vector.broadcast %cst_79 : f32 to vector<16x1xf32>
    %175 = arith.addf %171, %174 : vector<16x1xf32>
    %176 = math.rsqrt %175 : vector<16x1xf32>
    %177 = vector.broadcast %176 : vector<16x1xf32> to vector<16x32xf32>
    %178 = arith.mulf %173, %177 : vector<16x32xf32>
    %179 = vector.broadcast %159 : vector<1x32xf32> to vector<16x32xf32>
    %180 = arith.mulf %178, %179 : vector<16x32xf32>
    %181 = vector.broadcast %160 : vector<1x32xf32> to vector<16x32xf32>
    %182 = arith.addf %180, %181 : vector<16x32xf32>
    %183 = vector.broadcast %3 : vector<16x1xf32> to vector<16x32xf32>
    %184 = arith.mulf %182, %183 : vector<16x32xf32>
    %185 = vector.shape_cast %184 : vector<16x32xf32> to vector<2x8x32xf32>
    %c0_80 = arith.constant 0 : index
    %c0_81 = arith.constant 0 : index
    %c0_82 = arith.constant 0 : index
    %186 = vector.load %arg21[%c0_80, %c0_81, %c0_82] : memref<2x8x32xf32, #tpu.memory_space<vmem>>, vector<2x8x32xf32>
    tpu.vector_store %arg21[%c0_80, %c0_81, %c0_82], %185 {strides = array<i32>} : memref<2x8x32xf32, #tpu.memory_space<vmem>>, vector<2x8x32xf32>,
    return
  }
}

</mosaic_0001>

<llo_original>
// kernel: tpu_custom_call.1
$region0: #{tpu_custom_call.1}
  #allocation0 [shape = 'u32[]', space=smem, size = 0x4, offset = 0x4, fixed_abs, tag = 'smem constant byte address 0x4 - core index']
  #allocation1 [shape = 'u32[144,128]{1,0:T(1,128)}', space=vmem, size = 0x12000, scoped, tag = 'internal scratch']
  %s0 = inlined_call_operand.hbm [shape: f32[16,32], index: 0, kind: input, shape index: {}]
  %s1 = inlined_call_operand.hbm [shape: f32[16,32], index: 1, kind: input, shape index: {}]
  %s2 = inlined_call_operand.hbm [shape: f32[16,32], index: 2, kind: input, shape index: {}]
  %s3 = inlined_call_operand.vmem [shape: f32[16,1], index: 3, kind: input, shape index: {}]
  %s4 = inlined_call_operand.hbm [shape: f32[2,8,8], index: 4, kind: input, shape index: {}]
  %s5 = inlined_call_operand.vmem [shape: f32[32,32], index: 5, kind: input, shape index: {}]
  %s6 = inlined_call_operand.vmem [shape: f32[1,32], index: 6, kind: input, shape index: {}]
  %s7 = inlined_call_operand.vmem [shape: f32[32,32], index: 7, kind: input, shape index: {}]
  %s8 = inlined_call_operand.vmem [shape: f32[1,32], index: 8, kind: input, shape index: {}]
  %s9 = inlined_call_operand.vmem [shape: f32[32,32], index: 9, kind: input, shape index: {}]
  %s10 = inlined_call_operand.hbm [shape: f32[1,32], index: 10, kind: input, shape index: {}]
  %s11 = inlined_call_operand.hbm [shape: f32[32,32], index: 11, kind: input, shape index: {}]
  %s12 = inlined_call_operand.hbm [shape: f32[1,32], index: 12, kind: input, shape index: {}]
  %s13 = inlined_call_operand.hbm [shape: f32[1,32], index: 13, kind: input, shape index: {}]
  %s14 = inlined_call_operand.vmem [shape: f32[1,32], index: 14, kind: input, shape index: {}]
  %s15 = inlined_call_operand.vmem [shape: f32[32,64], index: 15, kind: input, shape index: {}]
  %s16 = inlined_call_operand.vmem [shape: f32[1,64], index: 16, kind: input, shape index: {}]
  %s17 = inlined_call_operand.vmem [shape: f32[64,32], index: 17, kind: input, shape index: {}]
  %s18 = inlined_call_operand.vmem [shape: f32[1,32], index: 18, kind: input, shape index: {}]
  %s19 = inlined_call_operand.vmem [shape: f32[1,32], index: 19, kind: input, shape index: {}]
  %s20 = inlined_call_operand.vmem [shape: f32[1,32], index: 20, kind: input, shape index: {}]
  %s21 = inlined_call_operand.hbm [shape: f32[2,8,32], index: 21, kind: output, shape index: {}]
  %s22 = sld [smem:[#allocation0]]
  $region126: #{tpu_custom_call.1} parent=0
    _
  %s24 = ssub.s32 1, %s22
  %s25 = scalar_select 0, %s24, %s22
  $region1: #{tpu_custom_call.1} parent=0
    #allocation2 [shape = 'u8[8192]{0}', space=vmem, size = 0x2000, scoped, tag = 'input window, operand 0, single buffered']
    #allocation3 [shape = 's32[1]{0}', space=sflag, size = 0x4, scoped, tag = 'scoped memory for tpu_custom_call.1']
    #allocation4 [shape = 's32[1]{0}', space=sflag, size = 0x4, scoped, tag = 'scoped memory for tpu_custom_call.1']
    #allocation5 [shape = 'u8[8192]{0}', space=vmem, size = 0x2000, scoped, tag = 'input window, operand 1, single buffered']
    #allocation6 [shape = 's32[1]{0}', space=sflag, size = 0x4, scoped, tag = 'scoped memory for tpu_custom_call.1']
    #allocation7 [shape = 'u8[8192]{0}', space=vmem, size = 0x2000, scoped, tag = 'input window, operand 2, single buffered']
    #allocation8 [shape = 'u8[8192]{0}', space=vmem, size = 0x2000, scoped, tag = 'input window, operand 4, single buffered']
    #allocation9 [shape = 's32[1]{0}', space=sflag, size = 0x4, scoped, tag = 'scoped memory for tpu_custom_call.1']
    #allocation10 [shape = 'u8[512]{0}', space=vmem, size = 0x400, scoped, tag = 'input window, operand 10, single buffered']
    #allocation11 [shape = 'u8[16384]{0}', space=vmem, size = 0x4000, scoped, tag = 'input window, operand 11, single buffered']
    #allocation12 [shape = 's32[1]{0}', space=sflag, size = 0x4, scoped, tag = 'scoped memory for tpu_custom_call.1']
    #allocation13 [shape = 'u8[512]{0}', space=vmem, size = 0x400, scoped, tag = 'input window, operand 12, single buffered']
    #allocation14 [shape = 'u8[512]{0}', space=vmem, size = 0x400, scoped, tag = 'input window, operand 13, single buffered']
    #allocation15 [shape = 's32[1]{0}', space=sflag, size = 0x4, scoped, tag = 'scoped memory for tpu_custom_call.1']
    #allocation16 [shape = 'u8[8192]{0}', space=vmem, size = 0x2000, scoped, tag = 'output window, operand 0, single buffered']
    %26 = vsyncpa [#allocation3], 0
    %27 = vsyncpa [#allocation6], 0
    %28 = vsyncpa [#allocation9], 0
    %29 = vsyncpa [#allocation12], 0
    %30 = vsyncpa [#allocation15], 0
    %31 = vsyncpa [#allocation4], 0
    // Predicated region
    $region2: #{tpu_custom_call.1} parent=1 // pred_check
      _
    $region3: #{tpu_custom_call.1} parent=1 // pred_check_branch
      %33 = sbr.rel (0) target = $region5
    $region4: #{tpu_custom_call.1} parent=1 // pred_region
      %s35 = ssub.s32 256, 256
      %36 = vsyncadd [#allocation3], %s35
      %s37 = sshll.u32 [#allocation2], 4
      %s38 = int_to_ptr.vmem [resolvable:$true] %s37
      %43 = dma.hbm_to_vmem [thread:$0]  %s0, 256, %s38, [#allocation3], 128, 128, 8
    $region5: #{tpu_custom_call.1} parent=1 // pred_fallthru
      _
    // Predicated region
    $region6: #{tpu_custom_call.1} parent=1 // pred_check
      _
    $region7: #{tpu_custom_call.1} parent=1 // pred_check_branch
      %45 = sbr.rel (0) target = $region9
    $region8: #{tpu_custom_call.1} parent=1 // pred_region
      %s47 = ssub.s32 256, 256
      %48 = vsyncadd [#allocation6], %s47
      %s49 = sshll.u32 [#allocation5], 4
      %s50 = int_to_ptr.vmem [resolvable:$true] %s49
      %55 = dma.hbm_to_vmem [thread:$0]  %s1, 256, %s50, [#allocation6], 128, 128, 8
    $region9: #{tpu_custom_call.1} parent=1 // pred_fallthru
      _
    // Predicated region
    $region10: #{tpu_custom_call.1} parent=1 // pred_check
      _
    $region11: #{tpu_custom_call.1} parent=1 // pred_check_branch
      %57 = sbr.rel (0) target = $region13
    $region12: #{tpu_custom_call.1} parent=1 // pred_region
      %s59 = ssub.s32 256, 256
      %60 = vsyncadd [#allocation6], %s59
      %s61 = sshll.u32 [#allocation7], 4
      %s62 = int_to_ptr.vmem [resolvable:$true] %s61
      %67 = dma.hbm_to_vmem [thread:$0]  %s2, 256, %s62, [#allocation6], 128, 128, 8
    $region13: #{tpu_custom_call.1} parent=1 // pred_fallthru
      _
    // Predicated region
    $region14: #{tpu_custom_call.1} parent=1 // pred_check
      _
    $region15: #{tpu_custom_call.1} parent=1 // pred_check_branch
      %69 = sbr.rel (0) target = $region17
    $region16: #{tpu_custom_call.1} parent=1 // pred_region
      _
    $region17: #{tpu_custom_call.1} parent=1 // pred_fallthru
      _
    // Predicated region
    $region18: #{tpu_custom_call.1} parent=1 // pred_check
      _
    $region19: #{tpu_custom_call.1} parent=1 // pred_check_branch
      %71 = sbr.rel (0) target = $region21
    $region20: #{tpu_custom_call.1} parent=1 // pred_region
      %s73 = ssub.s32 256, 256
      %74 = vsyncadd [#allocation9], %s73
      %s75 = sshll.u32 [#allocation8], 4
      %s76 = int_to_ptr.vmem [resolvable:$true] %s75
      %81 = dma.hbm_to_vmem [thread:$0]  %s4, 256, %s76, [#allocation9], 128, 128, 8
    $region21: #{tpu_custom_call.1} parent=1 // pred_fallthru
      _
    // Predicated region
    $region22: #{tpu_custom_call.1} parent=1 // pred_check
      _
    $region23: #{tpu_custom_call.1} parent=1 // pred_check_branch
      %83 = sbr.rel (0) target = $region25
    $region24: #{tpu_custom_call.1} parent=1 // pred_region
      _
    $region25: #{tpu_custom_call.1} parent=1 // pred_fallthru
      _
    // Predicated region
    $region26: #{tpu_custom_call.1} parent=1 // pred_check
      _
    $region27: #{tpu_custom_call.1} parent=1 // pred_check_branch
      %85 = sbr.rel (0) target = $region29
    $region28: #{tpu_custom_call.1} parent=1 // pred_region
      _
    $region29: #{tpu_custom_call.1} parent=1 // pred_fallthru
      _
    // Predicated region
    $region30: #{tpu_custom_call.1} parent=1 // pred_check
      _
    $region31: #{tpu_custom_call.1} parent=1 // pred_check_branch
      %87 = sbr.rel (0) target = $region33
    $region32: #{tpu_custom_call.1} parent=1 // pred_region
      _
    $region33: #{tpu_custom_call.1} parent=1 // pred_fallthru
      _
    // Predicated region
    $region34: #{tpu_custom_call.1} parent=1 // pred_check
      _
    $region35: #{tpu_custom_call.1} parent=1 // pred_check_branch
      %89 = sbr.rel (0) target = $region37
    $region36: #{tpu_custom_call.1} parent=1 // pred_region
      _
    $region37: #{tpu_custom_call.1} parent=1 // pred_fallthru
      _
    // Predicated region
    $region38: #{tpu_custom_call.1} parent=1 // pred_check
      _
    $region39: #{tpu_custom_call.1} parent=1 // pred_check_branch
      %91 = sbr.rel (0) target = $region41
    $region40: #{tpu_custom_call.1} parent=1 // pred_region
      _
    $region41: #{tpu_custom_call.1} parent=1 // pred_fallthru
      _
    // Predicated region
    $region42: #{tpu_custom_call.1} parent=1 // pred_check
      _
    $region43: #{tpu_custom_call.1} parent=1 // pred_check_branch
      %93 = sbr.rel (0) target = $region45
    $region44: #{tpu_custom_call.1} parent=1 // pred_region
      %s95 = ssub.s32 16, 16
      %96 = vsyncadd [#allocation9], %s95
      %s98 = sshll.u32 [#allocation10], 4
      %s99 = int_to_ptr.vmem [resolvable:$true] %s98
      %101 = dma.hbm_to_vmem [thread:$0]  %s10, 16, %s99, [#allocation9]
    $region45: #{tpu_custom_call.1} parent=1 // pred_fallthru
      _
    // Predicated region
    $region46: #{tpu_custom_call.1} parent=1 // pred_check
      _
    $region47: #{tpu_custom_call.1} parent=1 // pred_check_branch
      %103 = sbr.rel (0) target = $region49
    $region48: #{tpu_custom_call.1} parent=1 // pred_region
      %s105 = ssub.s32 512, 512
      %106 = vsyncadd [#allocation12], %s105
      %s107 = sshll.u32 [#allocation11], 4
      %s108 = int_to_ptr.vmem [resolvable:$true] %s107
      %113 = dma.hbm_to_vmem [thread:$0]  %s11, 512, %s108, [#allocation12], 128, 128, 8
    $region49: #{tpu_custom_call.1} parent=1 // pred_fallthru
      _
    // Predicated region
    $region50: #{tpu_custom_call.1} parent=1 // pred_check
      _
    $region51: #{tpu_custom_call.1} parent=1 // pred_check_branch
      %115 = sbr.rel (0) target = $region53
    $region52: #{tpu_custom_call.1} parent=1 // pred_region
      %s117 = ssub.s32 16, 16
      %118 = vsyncadd [#allocation12], %s117
      %s120 = sshll.u32 [#allocation13], 4
      %s121 = int_to_ptr.vmem [resolvable:$true] %s120
      %123 = dma.hbm_to_vmem [thread:$0]  %s12, 16, %s121, [#allocation12]
    $region53: #{tpu_custom_call.1} parent=1 // pred_fallthru
      _
    // Predicated region
    $region54: #{tpu_custom_call.1} parent=1 // pred_check
      _
    $region55: #{tpu_custom_call.1} parent=1 // pred_check_branch
      %125 = sbr.rel (0) target = $region57
    $region56: #{tpu_custom_call.1} parent=1 // pred_region
      %s127 = ssub.s32 16, 16
      %128 = vsyncadd [#allocation15], %s127
      %s130 = sshll.u32 [#allocation14], 4
      %s131 = int_to_ptr.vmem [resolvable:$true] %s130
      %133 = dma.hbm_to_vmem [thread:$0]  %s13, 16, %s131, [#allocation15]
    $region57: #{tpu_custom_call.1} parent=1 // pred_fallthru
      _
    // Predicated region
    $region58: #{tpu_custom_call.1} parent=1 // pred_check
      _
    $region59: #{tpu_custom_call.1} parent=1 // pred_check_branch
      %135 = sbr.rel (0) target = $region61
    $region60: #{tpu_custom_call.1} parent=1 // pred_region
      _
    $region61: #{tpu_custom_call.1} parent=1 // pred_fallthru
      _
    // Predicated region
    $region62: #{tpu_custom_call.1} parent=1 // pred_check
      _
    $region63: #{tpu_custom_call.1} parent=1 // pred_check_branch
      %137 = sbr.rel (0) target = $region65
    $region64: #{tpu_custom_call.1} parent=1 // pred_region
      _
    $region65: #{tpu_custom_call.1} parent=1 // pred_fallthru
      _
    // Predicated region
    $region66: #{tpu_custom_call.1} parent=1 // pred_check
      _
    $region67: #{tpu_custom_call.1} parent=1 // pred_check_branch
      %139 = sbr.rel (0) target = $region69
    $region68: #{tpu_custom_call.1} parent=1 // pred_region
      _
    $region69: #{tpu_custom_call.1} parent=1 // pred_fallthru
      _
    // Predicated region
    $region70: #{tpu_custom_call.1} parent=1 // pred_check
      _
    $region71: #{tpu_custom_call.1} parent=1 // pred_check_branch
      %141 = sbr.rel (0) target = $region73
    $region72: #{tpu_custom_call.1} parent=1 // pred_region
      _
    $region73: #{tpu_custom_call.1} parent=1 // pred_fallthru
      _
    // Predicated region
    $region74: #{tpu_custom_call.1} parent=1 // pred_check
      _
    $region75: #{tpu_custom_call.1} parent=1 // pred_check_branch
      %143 = sbr.rel (0) target = $region77
    $region76: #{tpu_custom_call.1} parent=1 // pred_region
      _
    $region77: #{tpu_custom_call.1} parent=1 // pred_fallthru
      _
    // Predicated region
    $region78: #{tpu_custom_call.1} parent=1 // pred_check
      _
    $region79: #{tpu_custom_call.1} parent=1 // pred_check_branch
      %145 = sbr.rel (0) target = $region81
    $region80: #{tpu_custom_call.1} parent=1 // pred_region
      _
    $region81: #{tpu_custom_call.1} parent=1 // pred_fallthru
      _
    // Predicated region
    $region82: #{tpu_custom_call.1} parent=1 // pred_check
      _
    $region83: #{tpu_custom_call.1} parent=1 // pred_check_branch
      %147 = sbr.rel (0) target = $region85
    $region84: #{tpu_custom_call.1} parent=1 // pred_region
      _
    $region85: #{tpu_custom_call.1} parent=1 // pred_fallthru
      _
    // Predicated region
    $region86: #{tpu_custom_call.1} parent=1 // pred_check
      _
    $region87: #{tpu_custom_call.1} parent=1 // pred_check_branch
      %149 = sbr.rel (0) target = $region89
    $region88: #{tpu_custom_call.1} parent=1 // pred_region
      %150 = dma.done [#allocation3], 256
    $region89: #{tpu_custom_call.1} parent=1 // pred_fallthru
      _
    // Predicated region
    $region90: #{tpu_custom_call.1} parent=1 // pred_check
      _
    $region91: #{tpu_custom_call.1} parent=1 // pred_check_branch
      %152 = sbr.rel (0) target = $region93
    $region92: #{tpu_custom_call.1} parent=1 // pred_region
      %153 = dma.done [#allocation6], 256
    $region93: #{tpu_custom_call.1} parent=1 // pred_fallthru
      _
    // Predicated region
    $region94: #{tpu_custom_call.1} parent=1 // pred_check
      _
    $region95: #{tpu_custom_call.1} parent=1 // pred_check_branch
      %155 = sbr.rel (0) target = $region97
    $region96: #{tpu_custom_call.1} parent=1 // pred_region
      %156 = dma.done [#allocation6], 256
    $region97: #{tpu_custom_call.1} parent=1 // pred_fallthru
      _
    // Predicated region
    $region98: #{tpu_custom_call.1} parent=1 // pred_check
      _
    $region99: #{tpu_custom_call.1} parent=1 // pred_check_branch
      %158 = sbr.rel (0) target = $region101
    $region100: #{tpu_custom_call.1} parent=1 // pred_region
      %159 = dma.done [#allocation9], 256
    $region101: #{tpu_custom_call.1} parent=1 // pred_fallthru
      _
    // Predicated region
    $region102: #{tpu_custom_call.1} parent=1 // pred_check
      _
    $region103: #{tpu_custom_call.1} parent=1 // pred_check_branch
      %161 = sbr.rel (0) target = $region105
    $region104: #{tpu_custom_call.1} parent=1 // pred_region
      %162 = dma.done [#allocation9], 16
    $region105: #{tpu_custom_call.1} parent=1 // pred_fallthru
      _
    // Predicated region
    $region106: #{tpu_custom_call.1} parent=1 // pred_check
      _
    $region107: #{tpu_custom_call.1} parent=1 // pred_check_branch
      %164 = sbr.rel (0) target = $region109
    $region108: #{tpu_custom_call.1} parent=1 // pred_region
      %165 = dma.done [#allocation12], 512
    $region109: #{tpu_custom_call.1} parent=1 // pred_fallthru
      _
    // Predicated region
    $region110: #{tpu_custom_call.1} parent=1 // pred_check
      _
    $region111: #{tpu_custom_call.1} parent=1 // pred_check_branch
      %167 = sbr.rel (0) target = $region113
    $region112: #{tpu_custom_call.1} parent=1 // pred_region
      %168 = dma.done [#allocation12], 16
    $region113: #{tpu_custom_call.1} parent=1 // pred_fallthru
      _
    // Predicated region
    $region114: #{tpu_custom_call.1} parent=1 // pred_check
      _
    $region115: #{tpu_custom_call.1} parent=1 // pred_check_branch
      %170 = sbr.rel (0) target = $region117
    $region116: #{tpu_custom_call.1} parent=1 // pred_region
      %171 = dma.done [#allocation15], 16
    $region117: #{tpu_custom_call.1} parent=1 // pred_fallthru
      _
    %v172 = vld [vmem:[#allocation2] sm:$0xff]
    %v173 = vld [vmem:[#allocation2 + $0x8] sm:$0xff]
    %v174 = vld [vmem:[#allocation5] sm:$0xff]
    %v175 = vld [vmem:[#allocation5 + $0x8] sm:$0xff]
    %v176 = vld [vmem:[#allocation7] sm:$0xff]
    %v177 = vld [vmem:[#allocation7 + $0x8] sm:$0xff]
    %v178 = vld [vmem:[%s3] sm:$0xff]
    %v179 = vld [vmem:[%s3 + $0x8] sm:$0xff]
    %v180 = vld [vmem:[#allocation8] sm:$0xff]
    %v181 = vld [vmem:[#allocation8 + $0x8] sm:$0xff]
    %v182 = vld [vmem:[%s5] sm:$0xff]
    %v183 = vld [vmem:[%s5 + $0x8] sm:$0xff]
    %v184 = vld [vmem:[%s5 + $0x10] sm:$0xff]
    %v185 = vld [vmem:[%s5 + $0x18] sm:$0xff]
    %v186 = vld [vmem:[%s6] sm:$0x1]
    %v188 = vlaneseq
    %v189 = vshrl.u32 %v188, 7
    %v190 = vsub.s32 0, %v189
    %v191 = vrot.slane %v186, %v190
    %vm193 = vcmask 261120
    %v195 = vsel %vm193, %v172, 0
    %v198 = vsel %vm193, %v173, 0
    %200 = vmatprep.subr.mxu0 0.0
    %201 = vmatpush1.msra.mxu0 %v182
    %202 = vmatprep.subr.mxu0 0.0
    %203 = vmatpush1.msra.mxu0 %v183
    %204 = vmatprep.subr.mxu0 0.0
    %205 = vmatpush1.msra.mxu0 %v184
    %206 = vmatprep.subr.mxu0 0.0
    %207 = vmatpush1.msra.mxu0 %v185
    %208 = vmatprep.subr.mxu0 0.0
    %209 = vmatpush1.msra.mxu0 0.0
    %210 = vmatprep.subr.mxu0 0.0
    %211 = vmatpush1.msra.mxu0 0.0
    %212 = vmatprep.subr.mxu0 0.0
    %213 = vmatpush1.msra.mxu0 0.0
    %214 = vmatprep.subr.mxu0 0.0
    %215 = vmatpush1.msra.mxu0 0.0
    %216 = vmatprep.subr.mxu0 0.0
    %217 = vmatpush1.msra.mxu0 0.0
    %218 = vmatprep.subr.mxu0 0.0
    %219 = vmatpush1.msra.mxu0 0.0
    %220 = vmatprep.subr.mxu0 0.0
    %221 = vmatpush1.msra.mxu0 0.0
    %222 = vmatprep.subr.mxu0 0.0
    %223 = vmatpush1.msra.mxu0 0.0
    %224 = vmatprep.subr.mxu0 0.0
    %225 = vmatpush1.msra.mxu0 0.0
    %226 = vmatprep.subr.mxu0 0.0
    %227 = vmatpush1.msra.mxu0 0.0
    %228 = vmatprep.subr.mxu0 0.0
    %229 = vmatpush1.msra.mxu0 0.0
    %230 = vmatprep.subr.mxu0 0.0
    %231 = vmatpush1.msra.mxu0 0.0
    %232 = vmatprep.subr.mxu0 0.0
    %233 = vmatpush1.msra.mxu0 0.0
    %234 = vmatprep.subr.mxu0 0.0
    %235 = vmatpush1.msra.mxu0 0.0
    %236 = vmatprep.subr.mxu0 0.0
    %237 = vmatpush1.msra.mxu0 0.0
    %238 = vmatprep.subr.mxu0 0.0
    %239 = vmatpush1.msra.mxu0 0.0
    %240 = vmatprep.subr.mxu0 0.0
    %241 = vmatpush1.msra.mxu0 0.0
    %242 = vmatprep.subr.mxu0 0.0
    %243 = vmatpush1.msra.mxu0 0.0
    %244 = vmatprep.subr.mxu0 0.0
    %245 = vmatpush1.msra.mxu0 0.0
    %246 = vmatprep.subr.mxu0 0.0
    %247 = vmatpush1.msra.mxu0 0.0
    %248 = vmatprep.subr.mxu0 0.0
    %249 = vmatpush1.msra.mxu0 0.0
    %250 = vmatprep.subr.mxu0 0.0
    %251 = vmatpush1.msra.mxu0 0.0
    %252 = vmatprep.subr.mxu0 0.0
    %253 = vmatpush1.msra.mxu0 0.0
    %254 = vmatprep.subr.mxu0 0.0
    %255 = vmatpush1.msra.mxu0 0.0
    %256 = vmatprep.subr.mxu0 0.0
    %257 = vmatpush1.msra.mxu0 0.0
    %258 = vmatprep.subr.mxu0 0.0
    %259 = vmatpush1.msra.mxu0 0.0
    %260 = vmatprep.subr.mxu0 0.0
    %261 = vmatpush1.msra.mxu0 0.0
    %262 = vmatprep.subr.mxu0 0.0
    %263 = vmatpush1.msra.mxu0 0.0
    %264 = vmatprep.mubr.f32.mxu0 0.0
    %265 = vmatmul.mubr.f32.gmra.mrb[0].mxu0 %v195
    %v266 = vpop.f32.mrb[0].mxu0
    %v267 = vadd.f32 %v191, %v266
    %v268 = vpop.f32.mrb[0].mxu0
    %269 = vmatprep.mubr.f32.mxu0 0.0
    %270 = vmatmul.mubr.f32.gmra.mrb[0].mxu0 %v198
    %v271 = vpop.f32.mrb[0].mxu0
    %v272 = vadd.f32 %v191, %v271
    %v273 = vpop.f32.mrb[0].mxu0
    %274 = vdwg.mxu0
    %v275 = vmul.f32 %v267, 0.35355338
    %v276 = vmul.f32 %v272, 0.35355338
    %v277 = vld [vmem:[%s7] sm:$0xff]
    %v278 = vld [vmem:[%s7 + $0x8] sm:$0xff]
    %v279 = vld [vmem:[%s7 + $0x10] sm:$0xff]
    %v280 = vld [vmem:[%s7 + $0x18] sm:$0xff]
    %v281 = vld [vmem:[%s8] sm:$0x1]
    %v283 = vlaneseq
    %v284 = vshrl.u32 %v283, 7
    %v285 = vsub.s32 0, %v284
    %v286 = vrot.slane %v281, %v285
    %v289 = vsel %vm193, %v174, 0
    %v292 = vsel %vm193, %v175, 0
    %294 = vmatprep.subr.mxu0 0.0
    %295 = vmatpush1.msra.mxu0 %v277
    %296 = vmatprep.subr.mxu0 0.0
    %297 = vmatpush1.msra.mxu0 %v278
    %298 = vmatprep.subr.mxu0 0.0
    %299 = vmatpush1.msra.mxu0 %v279
    %300 = vmatprep.subr.mxu0 0.0
    %301 = vmatpush1.msra.mxu0 %v280
    %302 = vmatprep.subr.mxu0 0.0
    %303 = vmatpush1.msra.mxu0 0.0
    %304 = vmatprep.subr.mxu0 0.0
    %305 = vmatpush1.msra.mxu0 0.0
    %306 = vmatprep.subr.mxu0 0.0
    %307 = vmatpush1.msra.mxu0 0.0
    %308 = vmatprep.subr.mxu0 0.0
    %309 = vmatpush1.msra.mxu0 0.0
    %310 = vmatprep.subr.mxu0 0.0
    %311 = vmatpush1.msra.mxu0 0.0
    %312 = vmatprep.subr.mxu0 0.0
    %313 = vmatpush1.msra.mxu0 0.0
    %314 = vmatprep.subr.mxu0 0.0
    %315 = vmatpush1.msra.mxu0 0.0
    %316 = vmatprep.subr.mxu0 0.0
    %317 = vmatpush1.msra.mxu0 0.0
    %318 = vmatprep.subr.mxu0 0.0
    %319 = vmatpush1.msra.mxu0 0.0
    %320 = vmatprep.subr.mxu0 0.0
    %321 = vmatpush1.msra.mxu0 0.0
    %322 = vmatprep.subr.mxu0 0.0
    %323 = vmatpush1.msra.mxu0 0.0
    %324 = vmatprep.subr.mxu0 0.0
    %325 = vmatpush1.msra.mxu0 0.0
    %326 = vmatprep.subr.mxu0 0.0
    %327 = vmatpush1.msra.mxu0 0.0
    %328 = vmatprep.subr.mxu0 0.0
    %329 = vmatpush1.msra.mxu0 0.0
    %330 = vmatprep.subr.mxu0 0.0
    %331 = vmatpush1.msra.mxu0 0.0
    %332 = vmatprep.subr.mxu0 0.0
    %333 = vmatpush1.msra.mxu0 0.0
    %334 = vmatprep.subr.mxu0 0.0
    %335 = vmatpush1.msra.mxu0 0.0
    %336 = vmatprep.subr.mxu0 0.0
    %337 = vmatpush1.msra.mxu0 0.0
    %338 = vmatprep.subr.mxu0 0.0
    %339 = vmatpush1.msra.mxu0 0.0
    %340 = vmatprep.subr.mxu0 0.0
    %341 = vmatpush1.msra.mxu0 0.0
    %342 = vmatprep.subr.mxu0 0.0
    %343 = vmatpush1.msra.mxu0 0.0
    %344 = vmatprep.subr.mxu0 0.0
    %345 = vmatpush1.msra.mxu0 0.0
    %346 = vmatprep.subr.mxu0 0.0
    %347 = vmatpush1.msra.mxu0 0.0
    %348 = vmatprep.subr.mxu0 0.0
    %349 = vmatpush1.msra.mxu0 0.0
    %350 = vmatprep.subr.mxu0 0.0
    %351 = vmatpush1.msra.mxu0 0.0
    %352 = vmatprep.subr.mxu0 0.0
    %353 = vmatpush1.msra.mxu0 0.0
    %354 = vmatprep.subr.mxu0 0.0
    %355 = vmatpush1.msra.mxu0 0.0
    %356 = vmatprep.subr.mxu0 0.0
    %357 = vmatpush1.msra.mxu0 0.0
    %358 = vmatprep.mubr.f32.mxu0 0.0
    %359 = vmatmul.mubr.f32.gmra.mrb[0].mxu0 %v289
    %v360 = vpop.f32.mrb[0].mxu0
    %v361 = vadd.f32 %v286, %v360
    %v362 = vpop.f32.mrb[0].mxu0
    %363 = vmatprep.mubr.f32.mxu0 0.0
    %364 = vmatmul.mubr.f32.gmra.mrb[0].mxu0 %v292
    %v365 = vpop.f32.mrb[0].mxu0
    %v366 = vadd.f32 %v286, %v365
    %v367 = vpop.f32.mrb[0].mxu0
    %368 = vdwg.mxu0
    %v369 = vld [vmem:[%s9] sm:$0xff]
    %v370 = vld [vmem:[%s9 + $0x8] sm:$0xff]
    %v371 = vld [vmem:[%s9 + $0x10] sm:$0xff]
    %v372 = vld [vmem:[%s9 + $0x18] sm:$0xff]
    %v373 = vld [vmem:[#allocation10] sm:$0x1]
    %v375 = vlaneseq
    %v376 = vshrl.u32 %v375, 7
    %v377 = vsub.s32 0, %v376
    %v378 = vrot.slane %v373, %v377
    %v381 = vsel %vm193, %v176, 0
    %v384 = vsel %vm193, %v177, 0
    %386 = vmatprep.subr.mxu0 0.0
    %387 = vmatpush1.msra.mxu0 %v369
    %388 = vmatprep.subr.mxu0 0.0
    %389 = vmatpush1.msra.mxu0 %v370
    %390 = vmatprep.subr.mxu0 0.0
    %391 = vmatpush1.msra.mxu0 %v371
    %392 = vmatprep.subr.mxu0 0.0
    %393 = vmatpush1.msra.mxu0 %v372
    %394 = vmatprep.subr.mxu0 0.0
    %395 = vmatpush1.msra.mxu0 0.0
    %396 = vmatprep.subr.mxu0 0.0
    %397 = vmatpush1.msra.mxu0 0.0
    %398 = vmatprep.subr.mxu0 0.0
    %399 = vmatpush1.msra.mxu0 0.0
    %400 = vmatprep.subr.mxu0 0.0
    %401 = vmatpush1.msra.mxu0 0.0
    %402 = vmatprep.subr.mxu0 0.0
    %403 = vmatpush1.msra.mxu0 0.0
    %404 = vmatprep.subr.mxu0 0.0
    %405 = vmatpush1.msra.mxu0 0.0
    %406 = vmatprep.subr.mxu0 0.0
    %407 = vmatpush1.msra.mxu0 0.0
    %408 = vmatprep.subr.mxu0 0.0
    %409 = vmatpush1.msra.mxu0 0.0
    %410 = vmatprep.subr.mxu0 0.0
    %411 = vmatpush1.msra.mxu0 0.0
    %412 = vmatprep.subr.mxu0 0.0
    %413 = vmatpush1.msra.mxu0 0.0
    %414 = vmatprep.subr.mxu0 0.0
    %415 = vmatpush1.msra.mxu0 0.0
    %416 = vmatprep.subr.mxu0 0.0
    %417 = vmatpush1.msra.mxu0 0.0
    %418 = vmatprep.subr.mxu0 0.0
    %419 = vmatpush1.msra.mxu0 0.0
    %420 = vmatprep.subr.mxu0 0.0
    %421 = vmatpush1.msra.mxu0 0.0
    %422 = vmatprep.subr.mxu0 0.0
    %423 = vmatpush1.msra.mxu0 0.0
    %424 = vmatprep.subr.mxu0 0.0
    %425 = vmatpush1.msra.mxu0 0.0
    %426 = vmatprep.subr.mxu0 0.0
    %427 = vmatpush1.msra.mxu0 0.0
    %428 = vmatprep.subr.mxu0 0.0
    %429 = vmatpush1.msra.mxu0 0.0
    %430 = vmatprep.subr.mxu0 0.0
    %431 = vmatpush1.msra.mxu0 0.0
    %432 = vmatprep.subr.mxu0 0.0
    %433 = vmatpush1.msra.mxu0 0.0
    %434 = vmatprep.subr.mxu0 0.0
    %435 = vmatpush1.msra.mxu0 0.0
    %436 = vmatprep.subr.mxu0 0.0
    %437 = vmatpush1.msra.mxu0 0.0
    %438 = vmatprep.subr.mxu0 0.0
    %439 = vmatpush1.msra.mxu0 0.0
    %440 = vmatprep.subr.mxu0 0.0
    %441 = vmatpush1.msra.mxu0 0.0
    %442 = vmatprep.subr.mxu0 0.0
    %443 = vmatpush1.msra.mxu0 0.0
    %444 = vmatprep.subr.mxu0 0.0
    %445 = vmatpush1.msra.mxu0 0.0
    %446 = vmatprep.subr.mxu0 0.0
    %447 = vmatpush1.msra.mxu0 0.0
    %448 = vmatprep.subr.mxu0 0.0
    %449 = vmatpush1.msra.mxu0 0.0
    %450 = vmatprep.mubr.f32.mxu0 0.0
    %451 = vmatmul.mubr.f32.gmra.mrb[0].mxu0 %v381
    %v452 = vpop.f32.mrb[0].mxu0
    %v453 = vadd.f32 %v378, %v452
    %v454 = vpop.f32.mrb[0].mxu0
    %455 = vmatprep.mubr.f32.mxu0 0.0
    %456 = vmatmul.mubr.f32.gmra.mrb[0].mxu0 %v384
    %v457 = vpop.f32.mrb[0].mxu0
    %v458 = vadd.f32 %v378, %v457
    %v459 = vpop.f32.mrb[0].mxu0
    %460 = vdwg.mxu0
    %v461 = vld [vmem:[#allocation11] sm:$0xff]
    %v462 = vld [vmem:[#allocation11 + $0x8] sm:$0xff]
    %v463 = vld [vmem:[#allocation11 + $0x10] sm:$0xff]
    %v464 = vld [vmem:[#allocation11 + $0x18] sm:$0xff]
    %vm465 = vcmask 64512
    %v467 = vsel %vm465, %v275, 0
    %v470 = vsel %vm465, %v361, 0
    %472 = vmatprep.subr.mxu0 0.0
    %473 = vmatpush1.xpose.msra.mxu0 %v470
    %474 = vmatprep.subr.mxu0 0.0
    %475 = vmatpush1.xpose.msra.mxu0 0.0
    %476 = vmatprep.subr.mxu0 0.0
    %477 = vmatpush1.xpose.msra.mxu0 0.0
    %478 = vmatprep.subr.mxu0 0.0
    %479 = vmatpush1.xpose.msra.mxu0 0.0
    %480 = vmatprep.subr.mxu0 0.0
    %481 = vmatpush1.xpose.msra.mxu0 0.0
    %482 = vmatprep.subr.mxu0 0.0
    %483 = vmatpush1.xpose.msra.mxu0 0.0
    %484 = vmatprep.subr.mxu0 0.0
    %485 = vmatpush1.xpose.msra.mxu0 0.0
    %486 = vmatprep.subr.mxu0 0.0
    %487 = vmatpush1.xpose.msra.mxu0 0.0
    %488 = vmatprep.subr.mxu0 0.0
    %489 = vmatpush1.xpose.msra.mxu0 0.0
    %490 = vmatprep.subr.mxu0 0.0
    %491 = vmatpush1.xpose.msra.mxu0 0.0
    %492 = vmatprep.subr.mxu0 0.0
    %493 = vmatpush1.xpose.msra.mxu0 0.0
    %494 = vmatprep.subr.mxu0 0.0
    %495 = vmatpush1.xpose.msra.mxu0 0.0
    %496 = vmatprep.subr.mxu0 0.0
    %497 = vmatpush1.xpose.msra.mxu0 0.0
    %498 = vmatprep.subr.mxu0 0.0
    %499 = vmatpush1.xpose.msra.mxu0 0.0
    %500 = vmatprep.subr.mxu0 0.0
    %501 = vmatpush1.xpose.msra.mxu0 0.0
    %502 = vmatprep.subr.mxu0 0.0
    %503 = vmatpush1.xpose.msra.mxu0 0.0
    %504 = vmatprep.subr.mxu0 0.0
    %505 = vmatpush1.xpose.msra.mxu0 0.0
    %506 = vmatprep.subr.mxu0 0.0
    %507 = vmatpush1.xpose.msra.mxu0 0.0
    %508 = vmatprep.subr.mxu0 0.0
    %509 = vmatpush1.xpose.msra.mxu0 0.0
    %510 = vmatprep.subr.mxu0 0.0
    %511 = vmatpush1.xpose.msra.mxu0 0.0
    %512 = vmatprep.subr.mxu0 0.0
    %513 = vmatpush1.xpose.msra.mxu0 0.0
    %514 = vmatprep.subr.mxu0 0.0
    %515 = vmatpush1.xpose.msra.mxu0 0.0
    %516 = vmatprep.subr.mxu0 0.0
    %517 = vmatpush1.xpose.msra.mxu0 0.0
    %518 = vmatprep.subr.mxu0 0.0
    %519 = vmatpush1.xpose.msra.mxu0 0.0
    %520 = vmatprep.subr.mxu0 0.0
    %521 = vmatpush1.xpose.msra.mxu0 0.0
    %522 = vmatprep.subr.mxu0 0.0
    %523 = vmatpush1.xpose.msra.mxu0 0.0
    %524 = vmatprep.subr.mxu0 0.0
    %525 = vmatpush1.xpose.msra.mxu0 0.0
    %526 = vmatprep.subr.mxu0 0.0
    %527 = vmatpush1.xpose.msra.mxu0 0.0
    %528 = vmatprep.subr.mxu0 0.0
    %529 = vmatpush1.xpose.msra.mxu0 0.0
    %530 = vmatprep.subr.mxu0 0.0
    %531 = vmatpush1.xpose.msra.mxu0 0.0
    %532 = vmatprep.subr.mxu0 0.0
    %533 = vmatpush1.xpose.msra.mxu0 0.0
    %534 = vmatprep.subr.mxu0 0.0
    %535 = vmatpush1.xpose.msra.mxu0 0.0
    %536 = vmatprep.mubr.f32.mxu0 0.0
    %537 = vmatmul.mubr.f32.gmra.mrb[0].mxu0 %v467
    %v538 = vpop.f32.mrb[0].mxu0
    %v539 = vadd.f32 %v180, %v538
    %v540 = vpop.f32.mrb[0].mxu0
    %541 = vdwg.mxu0
    %v543 = vsel %vm465, %v276, 0
    %v546 = vsel %vm465, %v366, 0
    %548 = vmatprep.subr.mxu0 0.0
    %549 = vmatpush1.xpose.msra.mxu0 %v546
    %550 = vmatprep.subr.mxu0 0.0
    %551 = vmatpush1.xpose.msra.mxu0 0.0
    %552 = vmatprep.subr.mxu0 0.0
    %553 = vmatpush1.xpose.msra.mxu0 0.0
    %554 = vmatprep.subr.mxu0 0.0
    %555 = vmatpush1.xpose.msra.mxu0 0.0
    %556 = vmatprep.subr.mxu0 0.0
    %557 = vmatpush1.xpose.msra.mxu0 0.0
    %558 = vmatprep.subr.mxu0 0.0
    %559 = vmatpush1.xpose.msra.mxu0 0.0
    %560 = vmatprep.subr.mxu0 0.0
    %561 = vmatpush1.xpose.msra.mxu0 0.0
    %562 = vmatprep.subr.mxu0 0.0
    %563 = vmatpush1.xpose.msra.mxu0 0.0
    %564 = vmatprep.subr.mxu0 0.0
    %565 = vmatpush1.xpose.msra.mxu0 0.0
    %566 = vmatprep.subr.mxu0 0.0
    %567 = vmatpush1.xpose.msra.mxu0 0.0
    %568 = vmatprep.subr.mxu0 0.0
    %569 = vmatpush1.xpose.msra.mxu0 0.0
    %570 = vmatprep.subr.mxu0 0.0
    %571 = vmatpush1.xpose.msra.mxu0 0.0
    %572 = vmatprep.subr.mxu0 0.0
    %573 = vmatpush1.xpose.msra.mxu0 0.0
    %574 = vmatprep.subr.mxu0 0.0
    %575 = vmatpush1.xpose.msra.mxu0 0.0
    %576 = vmatprep.subr.mxu0 0.0
    %577 = vmatpush1.xpose.msra.mxu0 0.0
    %578 = vmatprep.subr.mxu0 0.0
    %579 = vmatpush1.xpose.msra.mxu0 0.0
    %580 = vmatprep.subr.mxu0 0.0
    %581 = vmatpush1.xpose.msra.mxu0 0.0
    %582 = vmatprep.subr.mxu0 0.0
    %583 = vmatpush1.xpose.msra.mxu0 0.0
    %584 = vmatprep.subr.mxu0 0.0
    %585 = vmatpush1.xpose.msra.mxu0 0.0
    %586 = vmatprep.subr.mxu0 0.0
    %587 = vmatpush1.xpose.msra.mxu0 0.0
    %588 = vmatprep.subr.mxu0 0.0
    %589 = vmatpush1.xpose.msra.mxu0 0.0
    %590 = vmatprep.subr.mxu0 0.0
    %591 = vmatpush1.xpose.msra.mxu0 0.0
    %592 = vmatprep.subr.mxu0 0.0
    %593 = vmatpush1.xpose.msra.mxu0 0.0
    %594 = vmatprep.subr.mxu0 0.0
    %595 = vmatpush1.xpose.msra.mxu0 0.0
    %596 = vmatprep.subr.mxu0 0.0
    %597 = vmatpush1.xpose.msra.mxu0 0.0
    %598 = vmatprep.subr.mxu0 0.0
    %599 = vmatpush1.xpose.msra.mxu0 0.0
    %600 = vmatprep.subr.mxu0 0.0
    %601 = vmatpush1.xpose.msra.mxu0 0.0
    %602 = vmatprep.subr.mxu0 0.0
    %603 = vmatpush1.xpose.msra.mxu0 0.0
    %604 = vmatprep.subr.mxu0 0.0
    %605 = vmatpush1.xpose.msra.mxu0 0.0
    %606 = vmatprep.subr.mxu0 0.0
    %607 = vmatpush1.xpose.msra.mxu0 0.0
    %608 = vmatprep.subr.mxu0 0.0
    %609 = vmatpush1.xpose.msra.mxu0 0.0
    %610 = vmatprep.subr.mxu0 0.0
    %611 = vmatpush1.xpose.msra.mxu0 0.0
    %612 = vmatprep.mubr.f32.mxu0 0.0
    %613 = vmatmul.mubr.f32.gmra.mrb[0].mxu0 %v543
    %v614 = vpop.f32.mrb[0].mxu0
    %v615 = vadd.f32 %v181, %v614
    %v616 = vpop.f32.mrb[0].mxu0
    %617 = vdwg.mxu0
    %v618 = vsel %vm465, %v539, -inf
    %619 = vmax.xlane.f32.xlu0 %v618
    %v620 = vpop.xlane.xlu0 %619
    %v621 = vsel %vm465, %v615, -inf
    %622 = vmax.xlane.f32.xlu0 %v621
    %v623 = vpop.xlane.xlu0 %622
    %v624 = vsub.f32 %v539, %v620
    %v625 = vsub.f32 %v615, %v623
    %v626 = vmul.f32 %v624, 1.442695
    %v627 = vpow.pop %v626
    %v628 = vmul.f32 %v625, 1.442695
    %v629 = vpow.pop %v628
    %v630 = vsel %vm465, %v627, 0.0
    %631 = vadd.xlane.f32.xlu0 %v630
    %v632 = vpop.xlane.xlu0 %631
    %v633 = vsel %vm465, %v629, 0.0
    %634 = vadd.xlane.f32.xlu0 %v633
    %v635 = vpop.xlane.xlu0 %634
    %v636 = vrcp.pop %v632
    %v637 = vrcp.pop %v635
    %v638 = vmul.f32 %v627, %v636
    %v639 = vmul.f32 %v629, %v637
    %v641 = vsel %vm465, %v638, 0
    %643 = vmatprep.subr.mxu0 0.0
    %644 = vmatpush1.msra.mxu0 %v453
    %645 = vmatprep.subr.mxu0 0.0
    %646 = vmatpush1.msra.mxu0 0.0
    %647 = vmatprep.subr.mxu0 0.0
    %648 = vmatpush1.msra.mxu0 0.0
    %649 = vmatprep.subr.mxu0 0.0
    %650 = vmatpush1.msra.mxu0 0.0
    %651 = vmatprep.subr.mxu0 0.0
    %652 = vmatpush1.msra.mxu0 0.0
    %653 = vmatprep.subr.mxu0 0.0
    %654 = vmatpush1.msra.mxu0 0.0
    %655 = vmatprep.subr.mxu0 0.0
    %656 = vmatpush1.msra.mxu0 0.0
    %657 = vmatprep.subr.mxu0 0.0
    %658 = vmatpush1.msra.mxu0 0.0
    %659 = vmatprep.subr.mxu0 0.0
    %660 = vmatpush1.msra.mxu0 0.0
    %661 = vmatprep.subr.mxu0 0.0
    %662 = vmatpush1.msra.mxu0 0.0
    %663 = vmatprep.subr.mxu0 0.0
    %664 = vmatpush1.msra.mxu0 0.0
    %665 = vmatprep.subr.mxu0 0.0
    %666 = vmatpush1.msra.mxu0 0.0
    %667 = vmatprep.subr.mxu0 0.0
    %668 = vmatpush1.msra.mxu0 0.0
    %669 = vmatprep.subr.mxu0 0.0
    %670 = vmatpush1.msra.mxu0 0.0
    %671 = vmatprep.subr.mxu0 0.0
    %672 = vmatpush1.msra.mxu0 0.0
    %673 = vmatprep.subr.mxu0 0.0
    %674 = vmatpush1.msra.mxu0 0.0
    %675 = vmatprep.subr.mxu0 0.0
    %676 = vmatpush1.msra.mxu0 0.0
    %677 = vmatprep.subr.mxu0 0.0
    %678 = vmatpush1.msra.mxu0 0.0
    %679 = vmatprep.subr.mxu0 0.0
    %680 = vmatpush1.msra.mxu0 0.0
    %681 = vmatprep.subr.mxu0 0.0
    %682 = vmatpush1.msra.mxu0 0.0
    %683 = vmatprep.subr.mxu0 0.0
    %684 = vmatpush1.msra.mxu0 0.0
    %685 = vmatprep.subr.mxu0 0.0
    %686 = vmatpush1.msra.mxu0 0.0
    %687 = vmatprep.subr.mxu0 0.0
    %688 = vmatpush1.msra.mxu0 0.0
    %689 = vmatprep.subr.mxu0 0.0
    %690 = vmatpush1.msra.mxu0 0.0
    %691 = vmatprep.subr.mxu0 0.0
    %692 = vmatpush1.msra.mxu0 0.0
    %693 = vmatprep.subr.mxu0 0.0
    %694 = vmatpush1.msra.mxu0 0.0
    %695 = vmatprep.subr.mxu0 0.0
    %696 = vmatpush1.msra.mxu0 0.0
    %697 = vmatprep.subr.mxu0 0.0
    %698 = vmatpush1.msra.mxu0 0.0
    %699 = vmatprep.subr.mxu0 0.0
    %700 = vmatpush1.msra.mxu0 0.0
    %701 = vmatprep.subr.mxu0 0.0
    %702 = vmatpush1.msra.mxu0 0.0
    %703 = vmatprep.subr.mxu0 0.0
    %704 = vmatpush1.msra.mxu0 0.0
    %705 = vmatprep.subr.mxu0 0.0
    %706 = vmatpush1.msra.mxu0 0.0
    %707 = vmatprep.mubr.f32.mxu0 0.0
    %708 = vmatmul.mubr.f32.gmra.mrb[0].mxu0 %v641
    %v709 = vpop.f32.mrb[0].mxu0
    %v710 = vadd.f32 0.0, %v709
    %v711 = vpop.f32.mrb[0].mxu0
    %712 = vdwg.mxu0
    %v714 = vsel %vm465, %v639, 0
    %716 = vmatprep.subr.mxu0 0.0
    %717 = vmatpush1.msra.mxu0 %v458
    %718 = vmatprep.subr.mxu0 0.0
    %719 = vmatpush1.msra.mxu0 0.0
    %720 = vmatprep.subr.mxu0 0.0
    %721 = vmatpush1.msra.mxu0 0.0
    %722 = vmatprep.subr.mxu0 0.0
    %723 = vmatpush1.msra.mxu0 0.0
    %724 = vmatprep.subr.mxu0 0.0
    %725 = vmatpush1.msra.mxu0 0.0
    %726 = vmatprep.subr.mxu0 0.0
    %727 = vmatpush1.msra.mxu0 0.0
    %728 = vmatprep.subr.mxu0 0.0
    %729 = vmatpush1.msra.mxu0 0.0
    %730 = vmatprep.subr.mxu0 0.0
    %731 = vmatpush1.msra.mxu0 0.0
    %732 = vmatprep.subr.mxu0 0.0
    %733 = vmatpush1.msra.mxu0 0.0
    %734 = vmatprep.subr.mxu0 0.0
    %735 = vmatpush1.msra.mxu0 0.0
    %736 = vmatprep.subr.mxu0 0.0
    %737 = vmatpush1.msra.mxu0 0.0
    %738 = vmatprep.subr.mxu0 0.0
    %739 = vmatpush1.msra.mxu0 0.0
    %740 = vmatprep.subr.mxu0 0.0
    %741 = vmatpush1.msra.mxu0 0.0
    %742 = vmatprep.subr.mxu0 0.0
    %743 = vmatpush1.msra.mxu0 0.0
    %744 = vmatprep.subr.mxu0 0.0
    %745 = vmatpush1.msra.mxu0 0.0
    %746 = vmatprep.subr.mxu0 0.0
    %747 = vmatpush1.msra.mxu0 0.0
    %748 = vmatprep.subr.mxu0 0.0
    %749 = vmatpush1.msra.mxu0 0.0
    %750 = vmatprep.subr.mxu0 0.0
    %751 = vmatpush1.msra.mxu0 0.0
    %752 = vmatprep.subr.mxu0 0.0
    %753 = vmatpush1.msra.mxu0 0.0
    %754 = vmatprep.subr.mxu0 0.0
    %755 = vmatpush1.msra.mxu0 0.0
    %756 = vmatprep.subr.mxu0 0.0
    %757 = vmatpush1.msra.mxu0 0.0
    %758 = vmatprep.subr.mxu0 0.0
    %759 = vmatpush1.msra.mxu0 0.0
    %760 = vmatprep.subr.mxu0 0.0
    %761 = vmatpush1.msra.mxu0 0.0
    %762 = vmatprep.subr.mxu0 0.0
    %763 = vmatpush1.msra.mxu0 0.0
    %764 = vmatprep.subr.mxu0 0.0
    %765 = vmatpush1.msra.mxu0 0.0
    %766 = vmatprep.subr.mxu0 0.0
    %767 = vmatpush1.msra.mxu0 0.0
    %768 = vmatprep.subr.mxu0 0.0
    %769 = vmatpush1.msra.mxu0 0.0
    %770 = vmatprep.subr.mxu0 0.0
    %771 = vmatpush1.msra.mxu0 0.0
    %772 = vmatprep.subr.mxu0 0.0
    %773 = vmatpush1.msra.mxu0 0.0
    %774 = vmatprep.subr.mxu0 0.0
    %775 = vmatpush1.msra.mxu0 0.0
    %776 = vmatprep.subr.mxu0 0.0
    %777 = vmatpush1.msra.mxu0 0.0
    %778 = vmatprep.subr.mxu0 0.0
    %779 = vmatpush1.msra.mxu0 0.0
    %780 = vmatprep.mubr.f32.mxu0 0.0
    %781 = vmatmul.mubr.f32.gmra.mrb[0].mxu0 %v714
    %v782 = vpop.f32.mrb[0].mxu0
    %v783 = vadd.f32 0.0, %v782
    %v784 = vpop.f32.mrb[0].mxu0
    %785 = vdwg.mxu0
    %786 = vrot.lane.b32.xlu0 %v275, 120
    %v787 = vpop.permute.xlu0 %786
    %788 = vrot.lane.b32.xlu0 %v361, 120
    %v789 = vpop.permute.xlu0 %788
    %v790 = vsel %vm465, %v787, 0
    %v792 = vsel %vm465, %v789, 0
    %794 = vmatprep.subr.mxu0 0.0
    %795 = vmatpush1.xpose.msra.mxu0 %v792
    %796 = vmatprep.subr.mxu0 0.0
    %797 = vmatpush1.xpose.msra.mxu0 0.0
    %798 = vmatprep.subr.mxu0 0.0
    %799 = vmatpush1.xpose.msra.mxu0 0.0
    %800 = vmatprep.subr.mxu0 0.0
    %801 = vmatpush1.xpose.msra.mxu0 0.0
    %802 = vmatprep.subr.mxu0 0.0
    %803 = vmatpush1.xpose.msra.mxu0 0.0
    %804 = vmatprep.subr.mxu0 0.0
    %805 = vmatpush1.xpose.msra.mxu0 0.0
    %806 = vmatprep.subr.mxu0 0.0
    %807 = vmatpush1.xpose.msra.mxu0 0.0
    %808 = vmatprep.subr.mxu0 0.0
    %809 = vmatpush1.xpose.msra.mxu0 0.0
    %810 = vmatprep.subr.mxu0 0.0
    %811 = vmatpush1.xpose.msra.mxu0 0.0
    %812 = vmatprep.subr.mxu0 0.0
    %813 = vmatpush1.xpose.msra.mxu0 0.0
    %814 = vmatprep.subr.mxu0 0.0
    %815 = vmatpush1.xpose.msra.mxu0 0.0
    %816 = vmatprep.subr.mxu0 0.0
    %817 = vmatpush1.xpose.msra.mxu0 0.0
    %818 = vmatprep.subr.mxu0 0.0
    %819 = vmatpush1.xpose.msra.mxu0 0.0
    %820 = vmatprep.subr.mxu0 0.0
    %821 = vmatpush1.xpose.msra.mxu0 0.0
    %822 = vmatprep.subr.mxu0 0.0
    %823 = vmatpush1.xpose.msra.mxu0 0.0
    %824 = vmatprep.subr.mxu0 0.0
    %825 = vmatpush1.xpose.msra.mxu0 0.0
    %826 = vmatprep.subr.mxu0 0.0
    %827 = vmatpush1.xpose.msra.mxu0 0.0
    %828 = vmatprep.subr.mxu0 0.0
    %829 = vmatpush1.xpose.msra.mxu0 0.0
    %830 = vmatprep.subr.mxu0 0.0
    %831 = vmatpush1.xpose.msra.mxu0 0.0
    %832 = vmatprep.subr.mxu0 0.0
    %833 = vmatpush1.xpose.msra.mxu0 0.0
    %834 = vmatprep.subr.mxu0 0.0
    %835 = vmatpush1.xpose.msra.mxu0 0.0
    %836 = vmatprep.subr.mxu0 0.0
    %837 = vmatpush1.xpose.msra.mxu0 0.0
    %838 = vmatprep.subr.mxu0 0.0
    %839 = vmatpush1.xpose.msra.mxu0 0.0
    %840 = vmatprep.subr.mxu0 0.0
    %841 = vmatpush1.xpose.msra.mxu0 0.0
    %842 = vmatprep.subr.mxu0 0.0
    %843 = vmatpush1.xpose.msra.mxu0 0.0
    %844 = vmatprep.subr.mxu0 0.0
    %845 = vmatpush1.xpose.msra.mxu0 0.0
    %846 = vmatprep.subr.mxu0 0.0
    %847 = vmatpush1.xpose.msra.mxu0 0.0
    %848 = vmatprep.subr.mxu0 0.0
    %849 = vmatpush1.xpose.msra.mxu0 0.0
    %850 = vmatprep.subr.mxu0 0.0
    %851 = vmatpush1.xpose.msra.mxu0 0.0
    %852 = vmatprep.subr.mxu0 0.0
    %853 = vmatpush1.xpose.msra.mxu0 0.0
    %854 = vmatprep.subr.mxu0 0.0
    %855 = vmatpush1.xpose.msra.mxu0 0.0
    %856 = vmatprep.subr.mxu0 0.0
    %857 = vmatpush1.xpose.msra.mxu0 0.0
    %858 = vmatprep.mubr.f32.mxu0 0.0
    %859 = vmatmul.mubr.f32.gmra.mrb[0].mxu0 %v790
    %v860 = vpop.f32.mrb[0].mxu0
    %v861 = vadd.f32 %v180, %v860
    %v862 = vpop.f32.mrb[0].mxu0
    %863 = vdwg.mxu0
    %864 = vrot.lane.b32.xlu0 %v276, 120
    %v865 = vpop.permute.xlu0 %864
    %866 = vrot.lane.b32.xlu0 %v366, 120
    %v867 = vpop.permute.xlu0 %866
    %v868 = vsel %vm465, %v865, 0
    %v870 = vsel %vm465, %v867, 0
    %872 = vmatprep.subr.mxu0 0.0
    %873 = vmatpush1.xpose.msra.mxu0 %v870
    %874 = vmatprep.subr.mxu0 0.0
    %875 = vmatpush1.xpose.msra.mxu0 0.0
    %876 = vmatprep.subr.mxu0 0.0
    %877 = vmatpush1.xpose.msra.mxu0 0.0
    %878 = vmatprep.subr.mxu0 0.0
    %879 = vmatpush1.xpose.msra.mxu0 0.0
    %880 = vmatprep.subr.mxu0 0.0
    %881 = vmatpush1.xpose.msra.mxu0 0.0
    %882 = vmatprep.subr.mxu0 0.0
    %883 = vmatpush1.xpose.msra.mxu0 0.0
    %884 = vmatprep.subr.mxu0 0.0
    %885 = vmatpush1.xpose.msra.mxu0 0.0
    %886 = vmatprep.subr.mxu0 0.0
    %887 = vmatpush1.xpose.msra.mxu0 0.0
    %888 = vmatprep.subr.mxu0 0.0
    %889 = vmatpush1.xpose.msra.mxu0 0.0
    %890 = vmatprep.subr.mxu0 0.0
    %891 = vmatpush1.xpose.msra.mxu0 0.0
    %892 = vmatprep.subr.mxu0 0.0
    %893 = vmatpush1.xpose.msra.mxu0 0.0
    %894 = vmatprep.subr.mxu0 0.0
    %895 = vmatpush1.xpose.msra.mxu0 0.0
    %896 = vmatprep.subr.mxu0 0.0
    %897 = vmatpush1.xpose.msra.mxu0 0.0
    %898 = vmatprep.subr.mxu0 0.0
    %899 = vmatpush1.xpose.msra.mxu0 0.0
    %900 = vmatprep.subr.mxu0 0.0
    %901 = vmatpush1.xpose.msra.mxu0 0.0
    %902 = vmatprep.subr.mxu0 0.0
    %903 = vmatpush1.xpose.msra.mxu0 0.0
    %904 = vmatprep.subr.mxu0 0.0
    %905 = vmatpush1.xpose.msra.mxu0 0.0
    %906 = vmatprep.subr.mxu0 0.0
    %907 = vmatpush1.xpose.msra.mxu0 0.0
    %908 = vmatprep.subr.mxu0 0.0
    %909 = vmatpush1.xpose.msra.mxu0 0.0
    %910 = vmatprep.subr.mxu0 0.0
    %911 = vmatpush1.xpose.msra.mxu0 0.0
    %912 = vmatprep.subr.mxu0 0.0
    %913 = vmatpush1.xpose.msra.mxu0 0.0
    %914 = vmatprep.subr.mxu0 0.0
    %915 = vmatpush1.xpose.msra.mxu0 0.0
    %916 = vmatprep.subr.mxu0 0.0
    %917 = vmatpush1.xpose.msra.mxu0 0.0
    %918 = vmatprep.subr.mxu0 0.0
    %919 = vmatpush1.xpose.msra.mxu0 0.0
    %920 = vmatprep.subr.mxu0 0.0
    %921 = vmatpush1.xpose.msra.mxu0 0.0
    %922 = vmatprep.subr.mxu0 0.0
    %923 = vmatpush1.xpose.msra.mxu0 0.0
    %924 = vmatprep.subr.mxu0 0.0
    %925 = vmatpush1.xpose.msra.mxu0 0.0
    %926 = vmatprep.subr.mxu0 0.0
    %927 = vmatpush1.xpose.msra.mxu0 0.0
    %928 = vmatprep.subr.mxu0 0.0
    %929 = vmatpush1.xpose.msra.mxu0 0.0
    %930 = vmatprep.subr.mxu0 0.0
    %931 = vmatpush1.xpose.msra.mxu0 0.0
    %932 = vmatprep.subr.mxu0 0.0
    %933 = vmatpush1.xpose.msra.mxu0 0.0
    %934 = vmatprep.subr.mxu0 0.0
    %935 = vmatpush1.xpose.msra.mxu0 0.0
    %936 = vmatprep.mubr.f32.mxu0 0.0
    %937 = vmatmul.mubr.f32.gmra.mrb[0].mxu0 %v868
    %v938 = vpop.f32.mrb[0].mxu0
    %v939 = vadd.f32 %v181, %v938
    %v940 = vpop.f32.mrb[0].mxu0
    %941 = vdwg.mxu0
    %v942 = vsel %vm465, %v861, -inf
    %943 = vmax.xlane.f32.xlu0 %v942
    %v944 = vpop.xlane.xlu0 %943
    %v945 = vsel %vm465, %v939, -inf
    %946 = vmax.xlane.f32.xlu0 %v945
    %v947 = vpop.xlane.xlu0 %946
    %v948 = vsub.f32 %v861, %v944
    %v949 = vsub.f32 %v939, %v947
    %v950 = vmul.f32 %v948, 1.442695
    %v951 = vpow.pop %v950
    %v952 = vmul.f32 %v949, 1.442695
    %v953 = vpow.pop %v952
    %v954 = vsel %vm465, %v951, 0.0
    %955 = vadd.xlane.f32.xlu0 %v954
    %v956 = vpop.xlane.xlu0 %955
    %v957 = vsel %vm465, %v953, 0.0
    %958 = vadd.xlane.f32.xlu0 %v957
    %v959 = vpop.xlane.xlu0 %958
    %v960 = vrcp.pop %v956
    %v961 = vrcp.pop %v959
    %v962 = vmul.f32 %v951, %v960
    %v963 = vmul.f32 %v953, %v961
    %965 = vrot.lane.b32.xlu0 %v453, 120
    %v966 = vpop.permute.xlu0 %965
    %v969 = vsel %vm465, %v962, 0
    %971 = vmatprep.subr.mxu0 0.0
    %972 = vmatpush1.msra.mxu0 %v966
    %973 = vmatprep.subr.mxu0 0.0
    %974 = vmatpush1.msra.mxu0 0.0
    %975 = vmatprep.subr.mxu0 0.0
    %976 = vmatpush1.msra.mxu0 0.0
    %977 = vmatprep.subr.mxu0 0.0
    %978 = vmatpush1.msra.mxu0 0.0
    %979 = vmatprep.subr.mxu0 0.0
    %980 = vmatpush1.msra.mxu0 0.0
    %981 = vmatprep.subr.mxu0 0.0
    %982 = vmatpush1.msra.mxu0 0.0
    %983 = vmatprep.subr.mxu0 0.0
    %984 = vmatpush1.msra.mxu0 0.0
    %985 = vmatprep.subr.mxu0 0.0
    %986 = vmatpush1.msra.mxu0 0.0
    %987 = vmatprep.subr.mxu0 0.0
    %988 = vmatpush1.msra.mxu0 0.0
    %989 = vmatprep.subr.mxu0 0.0
    %990 = vmatpush1.msra.mxu0 0.0
    %991 = vmatprep.subr.mxu0 0.0
    %992 = vmatpush1.msra.mxu0 0.0
    %993 = vmatprep.subr.mxu0 0.0
    %994 = vmatpush1.msra.mxu0 0.0
    %995 = vmatprep.subr.mxu0 0.0
    %996 = vmatpush1.msra.mxu0 0.0
    %997 = vmatprep.subr.mxu0 0.0
    %998 = vmatpush1.msra.mxu0 0.0
    %999 = vmatprep.subr.mxu0 0.0
    %1000 = vmatpush1.msra.mxu0 0.0
    %1001 = vmatprep.subr.mxu0 0.0
    %1002 = vmatpush1.msra.mxu0 0.0
    %1003 = vmatprep.subr.mxu0 0.0
    %1004 = vmatpush1.msra.mxu0 0.0
    %1005 = vmatprep.subr.mxu0 0.0
    %1006 = vmatpush1.msra.mxu0 0.0
    %1007 = vmatprep.subr.mxu0 0.0
    %1008 = vmatpush1.msra.mxu0 0.0
    %1009 = vmatprep.subr.mxu0 0.0
    %1010 = vmatpush1.msra.mxu0 0.0
    %1011 = vmatprep.subr.mxu0 0.0
    %1012 = vmatpush1.msra.mxu0 0.0
    %1013 = vmatprep.subr.mxu0 0.0
    %1014 = vmatpush1.msra.mxu0 0.0
    %1015 = vmatprep.subr.mxu0 0.0
    %1016 = vmatpush1.msra.mxu0 0.0
    %1017 = vmatprep.subr.mxu0 0.0
    %1018 = vmatpush1.msra.mxu0 0.0
    %1019 = vmatprep.subr.mxu0 0.0
    %1020 = vmatpush1.msra.mxu0 0.0
    %1021 = vmatprep.subr.mxu0 0.0
    %1022 = vmatpush1.msra.mxu0 0.0
    %1023 = vmatprep.subr.mxu0 0.0
    %1024 = vmatpush1.msra.mxu0 0.0
    %1025 = vmatprep.subr.mxu0 0.0
    %1026 = vmatpush1.msra.mxu0 0.0
    %1027 = vmatprep.subr.mxu0 0.0
    %1028 = vmatpush1.msra.mxu0 0.0
    %1029 = vmatprep.subr.mxu0 0.0
    %1030 = vmatpush1.msra.mxu0 0.0
    %1031 = vmatprep.subr.mxu0 0.0
    %1032 = vmatpush1.msra.mxu0 0.0
    %1033 = vmatprep.subr.mxu0 0.0
    %1034 = vmatpush1.msra.mxu0 0.0
    %1035 = vmatprep.mubr.f32.mxu0 0.0
    %1036 = vmatmul.mubr.f32.gmra.mrb[0].mxu0 %v969
    %v1037 = vpop.f32.mrb[0].mxu0
    %v1038 = vadd.f32 0.0, %v1037
    %v1039 = vpop.f32.mrb[0].mxu0
    %1040 = vdwg.mxu0
    %1042 = vrot.lane.b32.xlu0 %v458, 120
    %v1043 = vpop.permute.xlu0 %1042
    %v1046 = vsel %vm465, %v963, 0
    %1048 = vmatprep.subr.mxu0 0.0
    %1049 = vmatpush1.msra.mxu0 %v1043
    %1050 = vmatprep.subr.mxu0 0.0
    %1051 = vmatpush1.msra.mxu0 0.0
    %1052 = vmatprep.subr.mxu0 0.0
    %1053 = vmatpush1.msra.mxu0 0.0
    %1054 = vmatprep.subr.mxu0 0.0
    %1055 = vmatpush1.msra.mxu0 0.0
    %1056 = vmatprep.subr.mxu0 0.0
    %1057 = vmatpush1.msra.mxu0 0.0
    %1058 = vmatprep.subr.mxu0 0.0
    %1059 = vmatpush1.msra.mxu0 0.0
    %1060 = vmatprep.subr.mxu0 0.0
    %1061 = vmatpush1.msra.mxu0 0.0
    %1062 = vmatprep.subr.mxu0 0.0
    %1063 = vmatpush1.msra.mxu0 0.0
    %1064 = vmatprep.subr.mxu0 0.0
    %1065 = vmatpush1.msra.mxu0 0.0
    %1066 = vmatprep.subr.mxu0 0.0
    %1067 = vmatpush1.msra.mxu0 0.0
    %1068 = vmatprep.subr.mxu0 0.0
    %1069 = vmatpush1.msra.mxu0 0.0
    %1070 = vmatprep.subr.mxu0 0.0
    %1071 = vmatpush1.msra.mxu0 0.0
    %1072 = vmatprep.subr.mxu0 0.0
    %1073 = vmatpush1.msra.mxu0 0.0
    %1074 = vmatprep.subr.mxu0 0.0
    %1075 = vmatpush1.msra.mxu0 0.0
    %1076 = vmatprep.subr.mxu0 0.0
    %1077 = vmatpush1.msra.mxu0 0.0
    %1078 = vmatprep.subr.mxu0 0.0
    %1079 = vmatpush1.msra.mxu0 0.0
    %1080 = vmatprep.subr.mxu0 0.0
    %1081 = vmatpush1.msra.mxu0 0.0
    %1082 = vmatprep.subr.mxu0 0.0
    %1083 = vmatpush1.msra.mxu0 0.0
    %1084 = vmatprep.subr.mxu0 0.0
    %1085 = vmatpush1.msra.mxu0 0.0
    %1086 = vmatprep.subr.mxu0 0.0
    %1087 = vmatpush1.msra.mxu0 0.0
    %1088 = vmatprep.subr.mxu0 0.0
    %1089 = vmatpush1.msra.mxu0 0.0
    %1090 = vmatprep.subr.mxu0 0.0
    %1091 = vmatpush1.msra.mxu0 0.0
    %1092 = vmatprep.subr.mxu0 0.0
    %1093 = vmatpush1.msra.mxu0 0.0
    %1094 = vmatprep.subr.mxu0 0.0
    %1095 = vmatpush1.msra.mxu0 0.0
    %1096 = vmatprep.subr.mxu0 0.0
    %1097 = vmatpush1.msra.mxu0 0.0
    %1098 = vmatprep.subr.mxu0 0.0
    %1099 = vmatpush1.msra.mxu0 0.0
    %1100 = vmatprep.subr.mxu0 0.0
    %1101 = vmatpush1.msra.mxu0 0.0
    %1102 = vmatprep.subr.mxu0 0.0
    %1103 = vmatpush1.msra.mxu0 0.0
    %1104 = vmatprep.subr.mxu0 0.0
    %1105 = vmatpush1.msra.mxu0 0.0
    %1106 = vmatprep.subr.mxu0 0.0
    %1107 = vmatpush1.msra.mxu0 0.0
    %1108 = vmatprep.subr.mxu0 0.0
    %1109 = vmatpush1.msra.mxu0 0.0
    %1110 = vmatprep.subr.mxu0 0.0
    %1111 = vmatpush1.msra.mxu0 0.0
    %1112 = vmatprep.mubr.f32.mxu0 0.0
    %1113 = vmatmul.mubr.f32.gmra.mrb[0].mxu0 %v1046
    %v1114 = vpop.f32.mrb[0].mxu0
    %v1115 = vadd.f32 0.0, %v1114
    %v1116 = vpop.f32.mrb[0].mxu0
    %1117 = vdwg.mxu0
    %v1119 = vsel %vm465, %v1038, 0
    %v1122 = vsel %vm465, %v1115, 0
    %1124 = vmatprep.subr.mxu0 0.0
    %1125 = vmatpush1.msra.mxu0 %v462
    %1126 = vmatprep.subr.mxu0 0.0
    %1127 = vmatpush1.msra.mxu0 0.0
    %1128 = vmatprep.subr.mxu0 0.0
    %1129 = vmatpush1.msra.mxu0 0.0
    %1130 = vmatprep.subr.mxu0 0.0
    %1131 = vmatpush1.msra.mxu0 0.0
    %1132 = vmatprep.subr.mxu0 0.0
    %1133 = vmatpush1.msra.mxu0 0.0
    %1134 = vmatprep.subr.mxu0 0.0
    %1135 = vmatpush1.msra.mxu0 0.0
    %1136 = vmatprep.subr.mxu0 0.0
    %1137 = vmatpush1.msra.mxu0 0.0
    %1138 = vmatprep.subr.mxu0 0.0
    %1139 = vmatpush1.msra.mxu0 0.0
    %1140 = vmatprep.subr.mxu0 0.0
    %1141 = vmatpush1.msra.mxu0 0.0
    %1142 = vmatprep.subr.mxu0 0.0
    %1143 = vmatpush1.msra.mxu0 0.0
    %1144 = vmatprep.subr.mxu0 0.0
    %1145 = vmatpush1.msra.mxu0 0.0
    %1146 = vmatprep.subr.mxu0 0.0
    %1147 = vmatpush1.msra.mxu0 0.0
    %1148 = vmatprep.subr.mxu0 0.0
    %1149 = vmatpush1.msra.mxu0 0.0
    %1150 = vmatprep.subr.mxu0 0.0
    %1151 = vmatpush1.msra.mxu0 0.0
    %1152 = vmatprep.subr.mxu0 0.0
    %1153 = vmatpush1.msra.mxu0 0.0
    %1154 = vmatprep.subr.mxu0 0.0
    %1155 = vmatpush1.msra.mxu0 0.0
    %1156 = vmatprep.subr.mxu0 0.0
    %1157 = vmatpush1.msra.mxu0 0.0
    %1158 = vmatprep.subr.mxu0 0.0
    %1159 = vmatpush1.msra.mxu0 0.0
    %1160 = vmatprep.subr.mxu0 0.0
    %1161 = vmatpush1.msra.mxu0 0.0
    %1162 = vmatprep.subr.mxu0 0.0
    %1163 = vmatpush1.msra.mxu0 0.0
    %1164 = vmatprep.subr.mxu0 0.0
    %1165 = vmatpush1.msra.mxu0 0.0
    %1166 = vmatprep.subr.mxu0 0.0
    %1167 = vmatpush1.msra.mxu0 0.0
    %1168 = vmatprep.subr.mxu0 0.0
    %1169 = vmatpush1.msra.mxu0 0.0
    %1170 = vmatprep.subr.mxu0 0.0
    %1171 = vmatpush1.msra.mxu0 0.0
    %1172 = vmatprep.subr.mxu0 0.0
    %1173 = vmatpush1.msra.mxu0 0.0
    %1174 = vmatprep.subr.mxu0 0.0
    %1175 = vmatpush1.msra.mxu0 0.0
    %1176 = vmatprep.subr.mxu0 0.0
    %1177 = vmatpush1.msra.mxu0 0.0
    %1178 = vmatprep.subr.mxu0 0.0
    %1179 = vmatpush1.msra.mxu0 0.0
    %1180 = vmatprep.subr.mxu0 0.0
    %1181 = vmatpush1.msra.mxu0 0.0
    %1182 = vmatprep.subr.mxu0 0.0
    %1183 = vmatpush1.msra.mxu0 0.0
    %1184 = vmatprep.subr.mxu0 0.0
    %1185 = vmatpush1.msra.mxu0 0.0
    %1186 = vmatprep.subr.mxu0 0.0
    %1187 = vmatpush1.msra.mxu0 0.0
    %1188 = vmatprep.mubr.f32.mxu0 0.0
    %1189 = vmatmul.mubr.f32.gmra.mrb[0].mxu0 %v1119
    %v1190 = vpop.f32.mrb[0].mxu0
    %v1191 = vadd.f32 0.0, %v1190
    %v1192 = vpop.f32.mrb[0].mxu0
    %1193 = vmatprep.mubr.f32.mxu0 0.0
    %1194 = vmatmul.mubr.f32.gmra.mrb[0].mxu0 %v1122
    %v1195 = vpop.f32.mrb[0].mxu0
    %v1196 = vadd.f32 0.0, %v1195
    %v1197 = vpop.f32.mrb[0].mxu0
    %1198 = vdwg.mxu0
    %v1200 = vsel %vm465, %v710, 0
    %v1203 = vsel %vm465, %v783, 0
    %1205 = vmatprep.subr.mxu0 0.0
    %1206 = vmatpush1.msra.mxu0 %v461
    %1207 = vmatprep.subr.mxu0 0.0
    %1208 = vmatpush1.msra.mxu0 0.0
    %1209 = vmatprep.subr.mxu0 0.0
    %1210 = vmatpush1.msra.mxu0 0.0
    %1211 = vmatprep.subr.mxu0 0.0
    %1212 = vmatpush1.msra.mxu0 0.0
    %1213 = vmatprep.subr.mxu0 0.0
    %1214 = vmatpush1.msra.mxu0 0.0
    %1215 = vmatprep.subr.mxu0 0.0
    %1216 = vmatpush1.msra.mxu0 0.0
    %1217 = vmatprep.subr.mxu0 0.0
    %1218 = vmatpush1.msra.mxu0 0.0
    %1219 = vmatprep.subr.mxu0 0.0
    %1220 = vmatpush1.msra.mxu0 0.0
    %1221 = vmatprep.subr.mxu0 0.0
    %1222 = vmatpush1.msra.mxu0 0.0
    %1223 = vmatprep.subr.mxu0 0.0
    %1224 = vmatpush1.msra.mxu0 0.0
    %1225 = vmatprep.subr.mxu0 0.0
    %1226 = vmatpush1.msra.mxu0 0.0
    %1227 = vmatprep.subr.mxu0 0.0
    %1228 = vmatpush1.msra.mxu0 0.0
    %1229 = vmatprep.subr.mxu0 0.0
    %1230 = vmatpush1.msra.mxu0 0.0
    %1231 = vmatprep.subr.mxu0 0.0
    %1232 = vmatpush1.msra.mxu0 0.0
    %1233 = vmatprep.subr.mxu0 0.0
    %1234 = vmatpush1.msra.mxu0 0.0
    %1235 = vmatprep.subr.mxu0 0.0
    %1236 = vmatpush1.msra.mxu0 0.0
    %1237 = vmatprep.subr.mxu0 0.0
    %1238 = vmatpush1.msra.mxu0 0.0
    %1239 = vmatprep.subr.mxu0 0.0
    %1240 = vmatpush1.msra.mxu0 0.0
    %1241 = vmatprep.subr.mxu0 0.0
    %1242 = vmatpush1.msra.mxu0 0.0
    %1243 = vmatprep.subr.mxu0 0.0
    %1244 = vmatpush1.msra.mxu0 0.0
    %1245 = vmatprep.subr.mxu0 0.0
    %1246 = vmatpush1.msra.mxu0 0.0
    %1247 = vmatprep.subr.mxu0 0.0
    %1248 = vmatpush1.msra.mxu0 0.0
    %1249 = vmatprep.subr.mxu0 0.0
    %1250 = vmatpush1.msra.mxu0 0.0
    %1251 = vmatprep.subr.mxu0 0.0
    %1252 = vmatpush1.msra.mxu0 0.0
    %1253 = vmatprep.subr.mxu0 0.0
    %1254 = vmatpush1.msra.mxu0 0.0
    %1255 = vmatprep.subr.mxu0 0.0
    %1256 = vmatpush1.msra.mxu0 0.0
    %1257 = vmatprep.subr.mxu0 0.0
    %1258 = vmatpush1.msra.mxu0 0.0
    %1259 = vmatprep.subr.mxu0 0.0
    %1260 = vmatpush1.msra.mxu0 0.0
    %1261 = vmatprep.subr.mxu0 0.0
    %1262 = vmatpush1.msra.mxu0 0.0
    %1263 = vmatprep.subr.mxu0 0.0
    %1264 = vmatpush1.msra.mxu0 0.0
    %1265 = vmatprep.subr.mxu0 0.0
    %1266 = vmatpush1.msra.mxu0 0.0
    %1267 = vmatprep.subr.mxu0 0.0
    %1268 = vmatpush1.msra.mxu0 0.0
    %1269 = vmatprep.mubr.f32.mxu0 0.0
    %1270 = vmatmul.mubr.f32.gmra.mrb[0].mxu0 %v1200
    %v1271 = vpop.f32.mrb[0].mxu0
    %v1272 = vadd.f32 %v1191, %v1271
    %v1273 = vpop.f32.mrb[0].mxu0
    %1274 = vmatprep.mubr.f32.mxu0 0.0
    %1275 = vmatmul.mubr.f32.gmra.mrb[0].mxu0 %v1203
    %v1276 = vpop.f32.mrb[0].mxu0
    %v1277 = vadd.f32 %v1196, %v1276
    %v1278 = vpop.f32.mrb[0].mxu0
    %1279 = vdwg.mxu0
    %1280 = vrot.lane.b32.xlu0 %v275, 112
    %v1281 = vpop.permute.xlu0 %1280
    %1282 = vrot.lane.b32.xlu0 %v361, 112
    %v1283 = vpop.permute.xlu0 %1282
    %v1284 = vsel %vm465, %v1281, 0
    %v1286 = vsel %vm465, %v1283, 0
    %1288 = vmatprep.subr.mxu0 0.0
    %1289 = vmatpush1.xpose.msra.mxu0 %v1286
    %1290 = vmatprep.subr.mxu0 0.0
    %1291 = vmatpush1.xpose.msra.mxu0 0.0
    %1292 = vmatprep.subr.mxu0 0.0
    %1293 = vmatpush1.xpose.msra.mxu0 0.0
    %1294 = vmatprep.subr.mxu0 0.0
    %1295 = vmatpush1.xpose.msra.mxu0 0.0
    %1296 = vmatprep.subr.mxu0 0.0
    %1297 = vmatpush1.xpose.msra.mxu0 0.0
    %1298 = vmatprep.subr.mxu0 0.0
    %1299 = vmatpush1.xpose.msra.mxu0 0.0
    %1300 = vmatprep.subr.mxu0 0.0
    %1301 = vmatpush1.xpose.msra.mxu0 0.0
    %1302 = vmatprep.subr.mxu0 0.0
    %1303 = vmatpush1.xpose.msra.mxu0 0.0
    %1304 = vmatprep.subr.mxu0 0.0
    %1305 = vmatpush1.xpose.msra.mxu0 0.0
    %1306 = vmatprep.subr.mxu0 0.0
    %1307 = vmatpush1.xpose.msra.mxu0 0.0
    %1308 = vmatprep.subr.mxu0 0.0
    %1309 = vmatpush1.xpose.msra.mxu0 0.0
    %1310 = vmatprep.subr.mxu0 0.0
    %1311 = vmatpush1.xpose.msra.mxu0 0.0
    %1312 = vmatprep.subr.mxu0 0.0
    %1313 = vmatpush1.xpose.msra.mxu0 0.0
    %1314 = vmatprep.subr.mxu0 0.0
    %1315 = vmatpush1.xpose.msra.mxu0 0.0
    %1316 = vmatprep.subr.mxu0 0.0
    %1317 = vmatpush1.xpose.msra.mxu0 0.0
    %1318 = vmatprep.subr.mxu0 0.0
    %1319 = vmatpush1.xpose.msra.mxu0 0.0
    %1320 = vmatprep.subr.mxu0 0.0
    %1321 = vmatpush1.xpose.msra.mxu0 0.0
    %1322 = vmatprep.subr.mxu0 0.0
    %1323 = vmatpush1.xpose.msra.mxu0 0.0
    %1324 = vmatprep.subr.mxu0 0.0
    %1325 = vmatpush1.xpose.msra.mxu0 0.0
    %1326 = vmatprep.subr.mxu0 0.0
    %1327 = vmatpush1.xpose.msra.mxu0 0.0
    %1328 = vmatprep.subr.mxu0 0.0
    %1329 = vmatpush1.xpose.msra.mxu0 0.0
    %1330 = vmatprep.subr.mxu0 0.0
    %1331 = vmatpush1.xpose.msra.mxu0 0.0
    %1332 = vmatprep.subr.mxu0 0.0
    %1333 = vmatpush1.xpose.msra.mxu0 0.0
    %1334 = vmatprep.subr.mxu0 0.0
    %1335 = vmatpush1.xpose.msra.mxu0 0.0
    %1336 = vmatprep.subr.mxu0 0.0
    %1337 = vmatpush1.xpose.msra.mxu0 0.0
    %1338 = vmatprep.subr.mxu0 0.0
    %1339 = vmatpush1.xpose.msra.mxu0 0.0
    %1340 = vmatprep.subr.mxu0 0.0
    %1341 = vmatpush1.xpose.msra.mxu0 0.0
    %1342 = vmatprep.subr.mxu0 0.0
    %1343 = vmatpush1.xpose.msra.mxu0 0.0
    %1344 = vmatprep.subr.mxu0 0.0
    %1345 = vmatpush1.xpose.msra.mxu0 0.0
    %1346 = vmatprep.subr.mxu0 0.0
    %1347 = vmatpush1.xpose.msra.mxu0 0.0
    %1348 = vmatprep.subr.mxu0 0.0
    %1349 = vmatpush1.xpose.msra.mxu0 0.0
    %1350 = vmatprep.subr.mxu0 0.0
    %1351 = vmatpush1.xpose.msra.mxu0 0.0
    %1352 = vmatprep.mubr.f32.mxu0 0.0
    %1353 = vmatmul.mubr.f32.gmra.mrb[0].mxu0 %v1284
    %v1354 = vpop.f32.mrb[0].mxu0
    %v1355 = vadd.f32 %v180, %v1354
    %v1356 = vpop.f32.mrb[0].mxu0
    %1357 = vdwg.mxu0
    %1358 = vrot.lane.b32.xlu0 %v276, 112
    %v1359 = vpop.permute.xlu0 %1358
    %1360 = vrot.lane.b32.xlu0 %v366, 112
    %v1361 = vpop.permute.xlu0 %1360
    %v1362 = vsel %vm465, %v1359, 0
    %v1364 = vsel %vm465, %v1361, 0
    %1366 = vmatprep.subr.mxu0 0.0
    %1367 = vmatpush1.xpose.msra.mxu0 %v1364
    %1368 = vmatprep.subr.mxu0 0.0
    %1369 = vmatpush1.xpose.msra.mxu0 0.0
    %1370 = vmatprep.subr.mxu0 0.0
    %1371 = vmatpush1.xpose.msra.mxu0 0.0
    %1372 = vmatprep.subr.mxu0 0.0
    %1373 = vmatpush1.xpose.msra.mxu0 0.0
    %1374 = vmatprep.subr.mxu0 0.0
    %1375 = vmatpush1.xpose.msra.mxu0 0.0
    %1376 = vmatprep.subr.mxu0 0.0
    %1377 = vmatpush1.xpose.msra.mxu0 0.0
    %1378 = vmatprep.subr.mxu0 0.0
    %1379 = vmatpush1.xpose.msra.mxu0 0.0
    %1380 = vmatprep.subr.mxu0 0.0
    %1381 = vmatpush1.xpose.msra.mxu0 0.0
    %1382 = vmatprep.subr.mxu0 0.0
    %1383 = vmatpush1.xpose.msra.mxu0 0.0
    %1384 = vmatprep.subr.mxu0 0.0
    %1385 = vmatpush1.xpose.msra.mxu0 0.0
    %1386 = vmatprep.subr.mxu0 0.0
    %1387 = vmatpush1.xpose.msra.mxu0 0.0
    %1388 = vmatprep.subr.mxu0 0.0
    %1389 = vmatpush1.xpose.msra.mxu0 0.0
    %1390 = vmatprep.subr.mxu0 0.0
    %1391 = vmatpush1.xpose.msra.mxu0 0.0
    %1392 = vmatprep.subr.mxu0 0.0
    %1393 = vmatpush1.xpose.msra.mxu0 0.0
    %1394 = vmatprep.subr.mxu0 0.0
    %1395 = vmatpush1.xpose.msra.mxu0 0.0
    %1396 = vmatprep.subr.mxu0 0.0
    %1397 = vmatpush1.xpose.msra.mxu0 0.0
    %1398 = vmatprep.subr.mxu0 0.0
    %1399 = vmatpush1.xpose.msra.mxu0 0.0
    %1400 = vmatprep.subr.mxu0 0.0
    %1401 = vmatpush1.xpose.msra.mxu0 0.0
    %1402 = vmatprep.subr.mxu0 0.0
    %1403 = vmatpush1.xpose.msra.mxu0 0.0
    %1404 = vmatprep.subr.mxu0 0.0
    %1405 = vmatpush1.xpose.msra.mxu0 0.0
    %1406 = vmatprep.subr.mxu0 0.0
    %1407 = vmatpush1.xpose.msra.mxu0 0.0
    %1408 = vmatprep.subr.mxu0 0.0
    %1409 = vmatpush1.xpose.msra.mxu0 0.0
    %1410 = vmatprep.subr.mxu0 0.0
    %1411 = vmatpush1.xpose.msra.mxu0 0.0
    %1412 = vmatprep.subr.mxu0 0.0
    %1413 = vmatpush1.xpose.msra.mxu0 0.0
    %1414 = vmatprep.subr.mxu0 0.0
    %1415 = vmatpush1.xpose.msra.mxu0 0.0
    %1416 = vmatprep.subr.mxu0 0.0
    %1417 = vmatpush1.xpose.msra.mxu0 0.0
    %1418 = vmatprep.subr.mxu0 0.0
    %1419 = vmatpush1.xpose.msra.mxu0 0.0
    %1420 = vmatprep.subr.mxu0 0.0
    %1421 = vmatpush1.xpose.msra.mxu0 0.0
    %1422 = vmatprep.subr.mxu0 0.0
    %1423 = vmatpush1.xpose.msra.mxu0 0.0
    %1424 = vmatprep.subr.mxu0 0.0
    %1425 = vmatpush1.xpose.msra.mxu0 0.0
    %1426 = vmatprep.subr.mxu0 0.0
    %1427 = vmatpush1.xpose.msra.mxu0 0.0
    %1428 = vmatprep.subr.mxu0 0.0
    %1429 = vmatpush1.xpose.msra.mxu0 0.0
    %1430 = vmatprep.mubr.f32.mxu0 0.0
    %1431 = vmatmul.mubr.f32.gmra.mrb[0].mxu0 %v1362
    %v1432 = vpop.f32.mrb[0].mxu0
    %v1433 = vadd.f32 %v181, %v1432
    %v1434 = vpop.f32.mrb[0].mxu0
    %1435 = vdwg.mxu0
    %v1436 = vsel %vm465, %v1355, -inf
    %1437 = vmax.xlane.f32.xlu0 %v1436
    %v1438 = vpop.xlane.xlu0 %1437
    %v1439 = vsel %vm465, %v1433, -inf
    %1440 = vmax.xlane.f32.xlu0 %v1439
    %v1441 = vpop.xlane.xlu0 %1440
    %v1442 = vsub.f32 %v1355, %v1438
    %v1443 = vsub.f32 %v1433, %v1441
    %v1444 = vmul.f32 %v1442, 1.442695
    %v1445 = vpow.pop %v1444
    %v1446 = vmul.f32 %v1443, 1.442695
    %v1447 = vpow.pop %v1446
    %v1448 = vsel %vm465, %v1445, 0.0
    %1449 = vadd.xlane.f32.xlu0 %v1448
    %v1450 = vpop.xlane.xlu0 %1449
    %v1451 = vsel %vm465, %v1447, 0.0
    %1452 = vadd.xlane.f32.xlu0 %v1451
    %v1453 = vpop.xlane.xlu0 %1452
    %v1454 = vrcp.pop %v1450
    %v1455 = vrcp.pop %v1453
    %v1456 = vmul.f32 %v1445, %v1454
    %v1457 = vmul.f32 %v1447, %v1455
    %1458 = vrot.lane.b32.xlu0 %v453, 112
    %v1459 = vpop.permute.xlu0 %1458
    %v1462 = vsel %vm465, %v1456, 0
    %1464 = vmatprep.subr.mxu0 0.0
    %1465 = vmatpush1.msra.mxu0 %v1459
    %1466 = vmatprep.subr.mxu0 0.0
    %1467 = vmatpush1.msra.mxu0 0.0
    %1468 = vmatprep.subr.mxu0 0.0
    %1469 = vmatpush1.msra.mxu0 0.0
    %1470 = vmatprep.subr.mxu0 0.0
    %1471 = vmatpush1.msra.mxu0 0.0
    %1472 = vmatprep.subr.mxu0 0.0
    %1473 = vmatpush1.msra.mxu0 0.0
    %1474 = vmatprep.subr.mxu0 0.0
    %1475 = vmatpush1.msra.mxu0 0.0
    %1476 = vmatprep.subr.mxu0 0.0
    %1477 = vmatpush1.msra.mxu0 0.0
    %1478 = vmatprep.subr.mxu0 0.0
    %1479 = vmatpush1.msra.mxu0 0.0
    %1480 = vmatprep.subr.mxu0 0.0
    %1481 = vmatpush1.msra.mxu0 0.0
    %1482 = vmatprep.subr.mxu0 0.0
    %1483 = vmatpush1.msra.mxu0 0.0
    %1484 = vmatprep.subr.mxu0 0.0
    %1485 = vmatpush1.msra.mxu0 0.0
    %1486 = vmatprep.subr.mxu0 0.0
    %1487 = vmatpush1.msra.mxu0 0.0
    %1488 = vmatprep.subr.mxu0 0.0
    %1489 = vmatpush1.msra.mxu0 0.0
    %1490 = vmatprep.subr.mxu0 0.0
    %1491 = vmatpush1.msra.mxu0 0.0
    %1492 = vmatprep.subr.mxu0 0.0
    %1493 = vmatpush1.msra.mxu0 0.0
    %1494 = vmatprep.subr.mxu0 0.0
    %1495 = vmatpush1.msra.mxu0 0.0
    %1496 = vmatprep.subr.mxu0 0.0
    %1497 = vmatpush1.msra.mxu0 0.0
    %1498 = vmatprep.subr.mxu0 0.0
    %1499 = vmatpush1.msra.mxu0 0.0
    %1500 = vmatprep.subr.mxu0 0.0
    %1501 = vmatpush1.msra.mxu0 0.0
    %1502 = vmatprep.subr.mxu0 0.0
    %1503 = vmatpush1.msra.mxu0 0.0
    %1504 = vmatprep.subr.mxu0 0.0
    %1505 = vmatpush1.msra.mxu0 0.0
    %1506 = vmatprep.subr.mxu0 0.0
    %1507 = vmatpush1.msra.mxu0 0.0
    %1508 = vmatprep.subr.mxu0 0.0
    %1509 = vmatpush1.msra.mxu0 0.0
    %1510 = vmatprep.subr.mxu0 0.0
    %1511 = vmatpush1.msra.mxu0 0.0
    %1512 = vmatprep.subr.mxu0 0.0
    %1513 = vmatpush1.msra.mxu0 0.0
    %1514 = vmatprep.subr.mxu0 0.0
    %1515 = vmatpush1.msra.mxu0 0.0
    %1516 = vmatprep.subr.mxu0 0.0
    %1517 = vmatpush1.msra.mxu0 0.0
    %1518 = vmatprep.subr.mxu0 0.0
    %1519 = vmatpush1.msra.mxu0 0.0
    %1520 = vmatprep.subr.mxu0 0.0
    %1521 = vmatpush1.msra.mxu0 0.0
    %1522 = vmatprep.subr.mxu0 0.0
    %1523 = vmatpush1.msra.mxu0 0.0
    %1524 = vmatprep.subr.mxu0 0.0
    %1525 = vmatpush1.msra.mxu0 0.0
    %1526 = vmatprep.subr.mxu0 0.0
    %1527 = vmatpush1.msra.mxu0 0.0
    %1528 = vmatprep.mubr.f32.mxu0 0.0
    %1529 = vmatmul.mubr.f32.gmra.mrb[0].mxu0 %v1462
    %v1530 = vpop.f32.mrb[0].mxu0
    %v1531 = vadd.f32 0.0, %v1530
    %v1532 = vpop.f32.mrb[0].mxu0
    %1533 = vdwg.mxu0
    %1534 = vrot.lane.b32.xlu0 %v458, 112
    %v1535 = vpop.permute.xlu0 %1534
    %v1538 = vsel %vm465, %v1457, 0
    %1540 = vmatprep.subr.mxu0 0.0
    %1541 = vmatpush1.msra.mxu0 %v1535
    %1542 = vmatprep.subr.mxu0 0.0
    %1543 = vmatpush1.msra.mxu0 0.0
    %1544 = vmatprep.subr.mxu0 0.0
    %1545 = vmatpush1.msra.mxu0 0.0
    %1546 = vmatprep.subr.mxu0 0.0
    %1547 = vmatpush1.msra.mxu0 0.0
    %1548 = vmatprep.subr.mxu0 0.0
    %1549 = vmatpush1.msra.mxu0 0.0
    %1550 = vmatprep.subr.mxu0 0.0
    %1551 = vmatpush1.msra.mxu0 0.0
    %1552 = vmatprep.subr.mxu0 0.0
    %1553 = vmatpush1.msra.mxu0 0.0
    %1554 = vmatprep.subr.mxu0 0.0
    %1555 = vmatpush1.msra.mxu0 0.0
    %1556 = vmatprep.subr.mxu0 0.0
    %1557 = vmatpush1.msra.mxu0 0.0
    %1558 = vmatprep.subr.mxu0 0.0
    %1559 = vmatpush1.msra.mxu0 0.0
    %1560 = vmatprep.subr.mxu0 0.0
    %1561 = vmatpush1.msra.mxu0 0.0
    %1562 = vmatprep.subr.mxu0 0.0
    %1563 = vmatpush1.msra.mxu0 0.0
    %1564 = vmatprep.subr.mxu0 0.0
    %1565 = vmatpush1.msra.mxu0 0.0
    %1566 = vmatprep.subr.mxu0 0.0
    %1567 = vmatpush1.msra.mxu0 0.0
    %1568 = vmatprep.subr.mxu0 0.0
    %1569 = vmatpush1.msra.mxu0 0.0
    %1570 = vmatprep.subr.mxu0 0.0
    %1571 = vmatpush1.msra.mxu0 0.0
    %1572 = vmatprep.subr.mxu0 0.0
    %1573 = vmatpush1.msra.mxu0 0.0
    %1574 = vmatprep.subr.mxu0 0.0
    %1575 = vmatpush1.msra.mxu0 0.0
    %1576 = vmatprep.subr.mxu0 0.0
    %1577 = vmatpush1.msra.mxu0 0.0
    %1578 = vmatprep.subr.mxu0 0.0
    %1579 = vmatpush1.msra.mxu0 0.0
    %1580 = vmatprep.subr.mxu0 0.0
    %1581 = vmatpush1.msra.mxu0 0.0
    %1582 = vmatprep.subr.mxu0 0.0
    %1583 = vmatpush1.msra.mxu0 0.0
    %1584 = vmatprep.subr.mxu0 0.0
    %1585 = vmatpush1.msra.mxu0 0.0
    %1586 = vmatprep.subr.mxu0 0.0
    %1587 = vmatpush1.msra.mxu0 0.0
    %1588 = vmatprep.subr.mxu0 0.0
    %1589 = vmatpush1.msra.mxu0 0.0
    %1590 = vmatprep.subr.mxu0 0.0
    %1591 = vmatpush1.msra.mxu0 0.0
    %1592 = vmatprep.subr.mxu0 0.0
    %1593 = vmatpush1.msra.mxu0 0.0
    %1594 = vmatprep.subr.mxu0 0.0
    %1595 = vmatpush1.msra.mxu0 0.0
    %1596 = vmatprep.subr.mxu0 0.0
    %1597 = vmatpush1.msra.mxu0 0.0
    %1598 = vmatprep.subr.mxu0 0.0
    %1599 = vmatpush1.msra.mxu0 0.0
    %1600 = vmatprep.subr.mxu0 0.0
    %1601 = vmatpush1.msra.mxu0 0.0
    %1602 = vmatprep.subr.mxu0 0.0
    %1603 = vmatpush1.msra.mxu0 0.0
    %1604 = vmatprep.mubr.f32.mxu0 0.0
    %1605 = vmatmul.mubr.f32.gmra.mrb[0].mxu0 %v1538
    %v1606 = vpop.f32.mrb[0].mxu0
    %v1607 = vadd.f32 0.0, %v1606
    %v1608 = vpop.f32.mrb[0].mxu0
    %1609 = vdwg.mxu0
    %v1611 = vsel %vm465, %v1531, 0
    %v1614 = vsel %vm465, %v1607, 0
    %1616 = vmatprep.subr.mxu0 0.0
    %1617 = vmatpush1.msra.mxu0 %v463
    %1618 = vmatprep.subr.mxu0 0.0
    %1619 = vmatpush1.msra.mxu0 0.0
    %1620 = vmatprep.subr.mxu0 0.0
    %1621 = vmatpush1.msra.mxu0 0.0
    %1622 = vmatprep.subr.mxu0 0.0
    %1623 = vmatpush1.msra.mxu0 0.0
    %1624 = vmatprep.subr.mxu0 0.0
    %1625 = vmatpush1.msra.mxu0 0.0
    %1626 = vmatprep.subr.mxu0 0.0
    %1627 = vmatpush1.msra.mxu0 0.0
    %1628 = vmatprep.subr.mxu0 0.0
    %1629 = vmatpush1.msra.mxu0 0.0
    %1630 = vmatprep.subr.mxu0 0.0
    %1631 = vmatpush1.msra.mxu0 0.0
    %1632 = vmatprep.subr.mxu0 0.0
    %1633 = vmatpush1.msra.mxu0 0.0
    %1634 = vmatprep.subr.mxu0 0.0
    %1635 = vmatpush1.msra.mxu0 0.0
    %1636 = vmatprep.subr.mxu0 0.0
    %1637 = vmatpush1.msra.mxu0 0.0
    %1638 = vmatprep.subr.mxu0 0.0
    %1639 = vmatpush1.msra.mxu0 0.0
    %1640 = vmatprep.subr.mxu0 0.0
    %1641 = vmatpush1.msra.mxu0 0.0
    %1642 = vmatprep.subr.mxu0 0.0
    %1643 = vmatpush1.msra.mxu0 0.0
    %1644 = vmatprep.subr.mxu0 0.0
    %1645 = vmatpush1.msra.mxu0 0.0
    %1646 = vmatprep.subr.mxu0 0.0
    %1647 = vmatpush1.msra.mxu0 0.0
    %1648 = vmatprep.subr.mxu0 0.0
    %1649 = vmatpush1.msra.mxu0 0.0
    %1650 = vmatprep.subr.mxu0 0.0
    %1651 = vmatpush1.msra.mxu0 0.0
    %1652 = vmatprep.subr.mxu0 0.0
    %1653 = vmatpush1.msra.mxu0 0.0
    %1654 = vmatprep.subr.mxu0 0.0
    %1655 = vmatpush1.msra.mxu0 0.0
    %1656 = vmatprep.subr.mxu0 0.0
    %1657 = vmatpush1.msra.mxu0 0.0
    %1658 = vmatprep.subr.mxu0 0.0
    %1659 = vmatpush1.msra.mxu0 0.0
    %1660 = vmatprep.subr.mxu0 0.0
    %1661 = vmatpush1.msra.mxu0 0.0
    %1662 = vmatprep.subr.mxu0 0.0
    %1663 = vmatpush1.msra.mxu0 0.0
    %1664 = vmatprep.subr.mxu0 0.0
    %1665 = vmatpush1.msra.mxu0 0.0
    %1666 = vmatprep.subr.mxu0 0.0
    %1667 = vmatpush1.msra.mxu0 0.0
    %1668 = vmatprep.subr.mxu0 0.0
    %1669 = vmatpush1.msra.mxu0 0.0
    %1670 = vmatprep.subr.mxu0 0.0
    %1671 = vmatpush1.msra.mxu0 0.0
    %1672 = vmatprep.subr.mxu0 0.0
    %1673 = vmatpush1.msra.mxu0 0.0
    %1674 = vmatprep.subr.mxu0 0.0
    %1675 = vmatpush1.msra.mxu0 0.0
    %1676 = vmatprep.subr.mxu0 0.0
    %1677 = vmatpush1.msra.mxu0 0.0
    %1678 = vmatprep.subr.mxu0 0.0
    %1679 = vmatpush1.msra.mxu0 0.0
    %1680 = vmatprep.mubr.f32.mxu0 0.0
    %1681 = vmatmul.mubr.f32.gmra.mrb[0].mxu0 %v1611
    %v1682 = vpop.f32.mrb[0].mxu0
    %v1683 = vadd.f32 0.0, %v1682
    %v1684 = vpop.f32.mrb[0].mxu0
    %1685 = vmatprep.mubr.f32.mxu0 0.0
    %1686 = vmatmul.mubr.f32.gmra.mrb[0].mxu0 %v1614
    %v1687 = vpop.f32.mrb[0].mxu0
    %v1688 = vadd.f32 0.0, %v1687
    %v1689 = vpop.f32.mrb[0].mxu0
    %1690 = vdwg.mxu0
    %v1691 = vadd.f32 %v1272, %v1683
    %v1692 = vadd.f32 %v1277, %v1688
    %1693 = vrot.lane.b32.xlu0 %v275, 104
    %v1694 = vpop.permute.xlu0 %1693
    %1695 = vrot.lane.b32.xlu0 %v361, 104
    %v1696 = vpop.permute.xlu0 %1695
    %v1697 = vsel %vm465, %v1694, 0
    %v1699 = vsel %vm465, %v1696, 0
    %1701 = vmatprep.subr.mxu0 0.0
    %1702 = vmatpush1.xpose.msra.mxu0 %v1699
    %1703 = vmatprep.subr.mxu0 0.0
    %1704 = vmatpush1.xpose.msra.mxu0 0.0
    %1705 = vmatprep.subr.mxu0 0.0
    %1706 = vmatpush1.xpose.msra.mxu0 0.0
    %1707 = vmatprep.subr.mxu0 0.0
    %1708 = vmatpush1.xpose.msra.mxu0 0.0
    %1709 = vmatprep.subr.mxu0 0.0
    %1710 = vmatpush1.xpose.msra.mxu0 0.0
    %1711 = vmatprep.subr.mxu0 0.0
    %1712 = vmatpush1.xpose.msra.mxu0 0.0
    %1713 = vmatprep.subr.mxu0 0.0
    %1714 = vmatpush1.xpose.msra.mxu0 0.0
    %1715 = vmatprep.subr.mxu0 0.0
    %1716 = vmatpush1.xpose.msra.mxu0 0.0
    %1717 = vmatprep.subr.mxu0 0.0
    %1718 = vmatpush1.xpose.msra.mxu0 0.0
    %1719 = vmatprep.subr.mxu0 0.0
    %1720 = vmatpush1.xpose.msra.mxu0 0.0
    %1721 = vmatprep.subr.mxu0 0.0
    %1722 = vmatpush1.xpose.msra.mxu0 0.0
    %1723 = vmatprep.subr.mxu0 0.0
    %1724 = vmatpush1.xpose.msra.mxu0 0.0
    %1725 = vmatprep.subr.mxu0 0.0
    %1726 = vmatpush1.xpose.msra.mxu0 0.0
    %1727 = vmatprep.subr.mxu0 0.0
    %1728 = vmatpush1.xpose.msra.mxu0 0.0
    %1729 = vmatprep.subr.mxu0 0.0
    %1730 = vmatpush1.xpose.msra.mxu0 0.0
    %1731 = vmatprep.subr.mxu0 0.0
    %1732 = vmatpush1.xpose.msra.mxu0 0.0
    %1733 = vmatprep.subr.mxu0 0.0
    %1734 = vmatpush1.xpose.msra.mxu0 0.0
    %1735 = vmatprep.subr.mxu0 0.0
    %1736 = vmatpush1.xpose.msra.mxu0 0.0
    %1737 = vmatprep.subr.mxu0 0.0
    %1738 = vmatpush1.xpose.msra.mxu0 0.0
    %1739 = vmatprep.subr.mxu0 0.0
    %1740 = vmatpush1.xpose.msra.mxu0 0.0
    %1741 = vmatprep.subr.mxu0 0.0
    %1742 = vmatpush1.xpose.msra.mxu0 0.0
    %1743 = vmatprep.subr.mxu0 0.0
    %1744 = vmatpush1.xpose.msra.mxu0 0.0
    %1745 = vmatprep.subr.mxu0 0.0
    %1746 = vmatpush1.xpose.msra.mxu0 0.0
    %1747 = vmatprep.subr.mxu0 0.0
    %1748 = vmatpush1.xpose.msra.mxu0 0.0
    %1749 = vmatprep.subr.mxu0 0.0
    %1750 = vmatpush1.xpose.msra.mxu0 0.0
    %1751 = vmatprep.subr.mxu0 0.0
    %1752 = vmatpush1.xpose.msra.mxu0 0.0
    %1753 = vmatprep.subr.mxu0 0.0
    %1754 = vmatpush1.xpose.msra.mxu0 0.0
    %1755 = vmatprep.subr.mxu0 0.0
    %1756 = vmatpush1.xpose.msra.mxu0 0.0
    %1757 = vmatprep.subr.mxu0 0.0
    %1758 = vmatpush1.xpose.msra.mxu0 0.0
    %1759 = vmatprep.subr.mxu0 0.0
    %1760 = vmatpush1.xpose.msra.mxu0 0.0
    %1761 = vmatprep.subr.mxu0 0.0
    %1762 = vmatpush1.xpose.msra.mxu0 0.0
    %1763 = vmatprep.subr.mxu0 0.0
    %1764 = vmatpush1.xpose.msra.mxu0 0.0
    %1765 = vmatprep.mubr.f32.mxu0 0.0
    %1766 = vmatmul.mubr.f32.gmra.mrb[0].mxu0 %v1697
    %v1767 = vpop.f32.mrb[0].mxu0
    %v1768 = vadd.f32 %v180, %v1767
    %v1769 = vpop.f32.mrb[0].mxu0
    %1770 = vdwg.mxu0
    %1771 = vrot.lane.b32.xlu0 %v276, 104
    %v1772 = vpop.permute.xlu0 %1771
    %1773 = vrot.lane.b32.xlu0 %v366, 104
    %v1774 = vpop.permute.xlu0 %1773
    %v1775 = vsel %vm465, %v1772, 0
    %v1777 = vsel %vm465, %v1774, 0
    %1779 = vmatprep.subr.mxu0 0.0
    %1780 = vmatpush1.xpose.msra.mxu0 %v1777
    %1781 = vmatprep.subr.mxu0 0.0
    %1782 = vmatpush1.xpose.msra.mxu0 0.0
    %1783 = vmatprep.subr.mxu0 0.0
    %1784 = vmatpush1.xpose.msra.mxu0 0.0
    %1785 = vmatprep.subr.mxu0 0.0
    %1786 = vmatpush1.xpose.msra.mxu0 0.0
    %1787 = vmatprep.subr.mxu0 0.0
    %1788 = vmatpush1.xpose.msra.mxu0 0.0
    %1789 = vmatprep.subr.mxu0 0.0
    %1790 = vmatpush1.xpose.msra.mxu0 0.0
    %1791 = vmatprep.subr.mxu0 0.0
    %1792 = vmatpush1.xpose.msra.mxu0 0.0
    %1793 = vmatprep.subr.mxu0 0.0
    %1794 = vmatpush1.xpose.msra.mxu0 0.0
    %1795 = vmatprep.subr.mxu0 0.0
    %1796 = vmatpush1.xpose.msra.mxu0 0.0
    %1797 = vmatprep.subr.mxu0 0.0
    %1798 = vmatpush1.xpose.msra.mxu0 0.0
    %1799 = vmatprep.subr.mxu0 0.0
    %1800 = vmatpush1.xpose.msra.mxu0 0.0
    %1801 = vmatprep.subr.mxu0 0.0
    %1802 = vmatpush1.xpose.msra.mxu0 0.0
    %1803 = vmatprep.subr.mxu0 0.0
    %1804 = vmatpush1.xpose.msra.mxu0 0.0
    %1805 = vmatprep.subr.mxu0 0.0
    %1806 = vmatpush1.xpose.msra.mxu0 0.0
    %1807 = vmatprep.subr.mxu0 0.0
    %1808 = vmatpush1.xpose.msra.mxu0 0.0
    %1809 = vmatprep.subr.mxu0 0.0
    %1810 = vmatpush1.xpose.msra.mxu0 0.0
    %1811 = vmatprep.subr.mxu0 0.0
    %1812 = vmatpush1.xpose.msra.mxu0 0.0
    %1813 = vmatprep.subr.mxu0 0.0
    %1814 = vmatpush1.xpose.msra.mxu0 0.0
    %1815 = vmatprep.subr.mxu0 0.0
    %1816 = vmatpush1.xpose.msra.mxu0 0.0
    %1817 = vmatprep.subr.mxu0 0.0
    %1818 = vmatpush1.xpose.msra.mxu0 0.0
    %1819 = vmatprep.subr.mxu0 0.0
    %1820 = vmatpush1.xpose.msra.mxu0 0.0
    %1821 = vmatprep.subr.mxu0 0.0
    %1822 = vmatpush1.xpose.msra.mxu0 0.0
    %1823 = vmatprep.subr.mxu0 0.0
    %1824 = vmatpush1.xpose.msra.mxu0 0.0
    %1825 = vmatprep.subr.mxu0 0.0
    %1826 = vmatpush1.xpose.msra.mxu0 0.0
    %1827 = vmatprep.subr.mxu0 0.0
    %1828 = vmatpush1.xpose.msra.mxu0 0.0
    %1829 = vmatprep.subr.mxu0 0.0
    %1830 = vmatpush1.xpose.msra.mxu0 0.0
    %1831 = vmatprep.subr.mxu0 0.0
    %1832 = vmatpush1.xpose.msra.mxu0 0.0
    %1833 = vmatprep.subr.mxu0 0.0
    %1834 = vmatpush1.xpose.msra.mxu0 0.0
    %1835 = vmatprep.subr.mxu0 0.0
    %1836 = vmatpush1.xpose.msra.mxu0 0.0
    %1837 = vmatprep.subr.mxu0 0.0
    %1838 = vmatpush1.xpose.msra.mxu0 0.0
    %1839 = vmatprep.subr.mxu0 0.0
    %1840 = vmatpush1.xpose.msra.mxu0 0.0
    %1841 = vmatprep.subr.mxu0 0.0
    %1842 = vmatpush1.xpose.msra.mxu0 0.0
    %1843 = vmatprep.mubr.f32.mxu0 0.0
    %1844 = vmatmul.mubr.f32.gmra.mrb[0].mxu0 %v1775
    %v1845 = vpop.f32.mrb[0].mxu0
    %v1846 = vadd.f32 %v181, %v1845
    %v1847 = vpop.f32.mrb[0].mxu0
    %1848 = vdwg.mxu0
    %v1849 = vsel %vm465, %v1768, -inf
    %1850 = vmax.xlane.f32.xlu0 %v1849
    %v1851 = vpop.xlane.xlu0 %1850
    %v1852 = vsel %vm465, %v1846, -inf
    %1853 = vmax.xlane.f32.xlu0 %v1852
    %v1854 = vpop.xlane.xlu0 %1853
    %v1855 = vsub.f32 %v1768, %v1851
    %v1856 = vsub.f32 %v1846, %v1854
    %v1857 = vmul.f32 %v1855, 1.442695
    %v1858 = vpow.pop %v1857
    %v1859 = vmul.f32 %v1856, 1.442695
    %v1860 = vpow.pop %v1859
    %v1861 = vsel %vm465, %v1858, 0.0
    %1862 = vadd.xlane.f32.xlu0 %v1861
    %v1863 = vpop.xlane.xlu0 %1862
    %v1864 = vsel %vm465, %v1860, 0.0
    %1865 = vadd.xlane.f32.xlu0 %v1864
    %v1866 = vpop.xlane.xlu0 %1865
    %v1867 = vrcp.pop %v1863
    %v1868 = vrcp.pop %v1866
    %v1869 = vmul.f32 %v1858, %v1867
    %v1870 = vmul.f32 %v1860, %v1868
    %1871 = vrot.lane.b32.xlu0 %v453, 104
    %v1872 = vpop.permute.xlu0 %1871
    %v1875 = vsel %vm465, %v1869, 0
    %1877 = vmatprep.subr.mxu0 0.0
    %1878 = vmatpush1.msra.mxu0 %v1872
    %1879 = vmatprep.subr.mxu0 0.0
    %1880 = vmatpush1.msra.mxu0 0.0
    %1881 = vmatprep.subr.mxu0 0.0
    %1882 = vmatpush1.msra.mxu0 0.0
    %1883 = vmatprep.subr.mxu0 0.0
    %1884 = vmatpush1.msra.mxu0 0.0
    %1885 = vmatprep.subr.mxu0 0.0
    %1886 = vmatpush1.msra.mxu0 0.0
    %1887 = vmatprep.subr.mxu0 0.0
    %1888 = vmatpush1.msra.mxu0 0.0
    %1889 = vmatprep.subr.mxu0 0.0
    %1890 = vmatpush1.msra.mxu0 0.0
    %1891 = vmatprep.subr.mxu0 0.0
    %1892 = vmatpush1.msra.mxu0 0.0
    %1893 = vmatprep.subr.mxu0 0.0
    %1894 = vmatpush1.msra.mxu0 0.0
    %1895 = vmatprep.subr.mxu0 0.0
    %1896 = vmatpush1.msra.mxu0 0.0
    %1897 = vmatprep.subr.mxu0 0.0
    %1898 = vmatpush1.msra.mxu0 0.0
    %1899 = vmatprep.subr.mxu0 0.0
    %1900 = vmatpush1.msra.mxu0 0.0
    %1901 = vmatprep.subr.mxu0 0.0
    %1902 = vmatpush1.msra.mxu0 0.0
    %1903 = vmatprep.subr.mxu0 0.0
    %1904 = vmatpush1.msra.mxu0 0.0
    %1905 = vmatprep.subr.mxu0 0.0
    %1906 = vmatpush1.msra.mxu0 0.0
    %1907 = vmatprep.subr.mxu0 0.0
    %1908 = vmatpush1.msra.mxu0 0.0
    %1909 = vmatprep.subr.mxu0 0.0
    %1910 = vmatpush1.msra.mxu0 0.0
    %1911 = vmatprep.subr.mxu0 0.0
    %1912 = vmatpush1.msra.mxu0 0.0
    %1913 = vmatprep.subr.mxu0 0.0
    %1914 = vmatpush1.msra.mxu0 0.0
    %1915 = vmatprep.subr.mxu0 0.0
    %1916 = vmatpush1.msra.mxu0 0.0
    %1917 = vmatprep.subr.mxu0 0.0
    %1918 = vmatpush1.msra.mxu0 0.0
    %1919 = vmatprep.subr.mxu0 0.0
    %1920 = vmatpush1.msra.mxu0 0.0
    %1921 = vmatprep.subr.mxu0 0.0
    %1922 = vmatpush1.msra.mxu0 0.0
    %1923 = vmatprep.subr.mxu0 0.0
    %1924 = vmatpush1.msra.mxu0 0.0
    %1925 = vmatprep.subr.mxu0 0.0
    %1926 = vmatpush1.msra.mxu0 0.0
    %1927 = vmatprep.subr.mxu0 0.0
    %1928 = vmatpush1.msra.mxu0 0.0
    %1929 = vmatprep.subr.mxu0 0.0
    %1930 = vmatpush1.msra.mxu0 0.0
    %1931 = vmatprep.subr.mxu0 0.0
    %1932 = vmatpush1.msra.mxu0 0.0
    %1933 = vmatprep.subr.mxu0 0.0
    %1934 = vmatpush1.msra.mxu0 0.0
    %1935 = vmatprep.subr.mxu0 0.0
    %1936 = vmatpush1.msra.mxu0 0.0
    %1937 = vmatprep.subr.mxu0 0.0
    %1938 = vmatpush1.msra.mxu0 0.0
    %1939 = vmatprep.subr.mxu0 0.0
    %1940 = vmatpush1.msra.mxu0 0.0
    %1941 = vmatprep.mubr.f32.mxu0 0.0
    %1942 = vmatmul.mubr.f32.gmra.mrb[0].mxu0 %v1875
    %v1943 = vpop.f32.mrb[0].mxu0
    %v1944 = vadd.f32 0.0, %v1943
    %v1945 = vpop.f32.mrb[0].mxu0
    %1946 = vdwg.mxu0
    %1947 = vrot.lane.b32.xlu0 %v458, 104
    %v1948 = vpop.permute.xlu0 %1947
    %v1951 = vsel %vm465, %v1870, 0
    %1953 = vmatprep.subr.mxu0 0.0
    %1954 = vmatpush1.msra.mxu0 %v1948
    %1955 = vmatprep.subr.mxu0 0.0
    %1956 = vmatpush1.msra.mxu0 0.0
    %1957 = vmatprep.subr.mxu0 0.0
    %1958 = vmatpush1.msra.mxu0 0.0
    %1959 = vmatprep.subr.mxu0 0.0
    %1960 = vmatpush1.msra.mxu0 0.0
    %1961 = vmatprep.subr.mxu0 0.0
    %1962 = vmatpush1.msra.mxu0 0.0
    %1963 = vmatprep.subr.mxu0 0.0
    %1964 = vmatpush1.msra.mxu0 0.0
    %1965 = vmatprep.subr.mxu0 0.0
    %1966 = vmatpush1.msra.mxu0 0.0
    %1967 = vmatprep.subr.mxu0 0.0
    %1968 = vmatpush1.msra.mxu0 0.0
    %1969 = vmatprep.subr.mxu0 0.0
    %1970 = vmatpush1.msra.mxu0 0.0
    %1971 = vmatprep.subr.mxu0 0.0
    %1972 = vmatpush1.msra.mxu0 0.0
    %1973 = vmatprep.subr.mxu0 0.0
    %1974 = vmatpush1.msra.mxu0 0.0
    %1975 = vmatprep.subr.mxu0 0.0
    %1976 = vmatpush1.msra.mxu0 0.0
    %1977 = vmatprep.subr.mxu0 0.0
    %1978 = vmatpush1.msra.mxu0 0.0
    %1979 = vmatprep.subr.mxu0 0.0
    %1980 = vmatpush1.msra.mxu0 0.0
    %1981 = vmatprep.subr.mxu0 0.0
    %1982 = vmatpush1.msra.mxu0 0.0
    %1983 = vmatprep.subr.mxu0 0.0
    %1984 = vmatpush1.msra.mxu0 0.0
    %1985 = vmatprep.subr.mxu0 0.0
    %1986 = vmatpush1.msra.mxu0 0.0
    %1987 = vmatprep.subr.mxu0 0.0
    %1988 = vmatpush1.msra.mxu0 0.0
    %1989 = vmatprep.subr.mxu0 0.0
    %1990 = vmatpush1.msra.mxu0 0.0
    %1991 = vmatprep.subr.mxu0 0.0
    %1992 = vmatpush1.msra.mxu0 0.0
    %1993 = vmatprep.subr.mxu0 0.0
    %1994 = vmatpush1.msra.mxu0 0.0
    %1995 = vmatprep.subr.mxu0 0.0
    %1996 = vmatpush1.msra.mxu0 0.0
    %1997 = vmatprep.subr.mxu0 0.0
    %1998 = vmatpush1.msra.mxu0 0.0
    %1999 = vmatprep.subr.mxu0 0.0
    %2000 = vmatpush1.msra.mxu0 0.0
    %2001 = vmatprep.subr.mxu0 0.0
    %2002 = vmatpush1.msra.mxu0 0.0
    %2003 = vmatprep.subr.mxu0 0.0
    %2004 = vmatpush1.msra.mxu0 0.0
    %2005 = vmatprep.subr.mxu0 0.0
    %2006 = vmatpush1.msra.mxu0 0.0
    %2007 = vmatprep.subr.mxu0 0.0
    %2008 = vmatpush1.msra.mxu0 0.0
    %2009 = vmatprep.subr.mxu0 0.0
    %2010 = vmatpush1.msra.mxu0 0.0
    %2011 = vmatprep.subr.mxu0 0.0
    %2012 = vmatpush1.msra.mxu0 0.0
    %2013 = vmatprep.subr.mxu0 0.0
    %2014 = vmatpush1.msra.mxu0 0.0
    %2015 = vmatprep.subr.mxu0 0.0
    %2016 = vmatpush1.msra.mxu0 0.0
    %2017 = vmatprep.mubr.f32.mxu0 0.0
    %2018 = vmatmul.mubr.f32.gmra.mrb[0].mxu0 %v1951
    %v2019 = vpop.f32.mrb[0].mxu0
    %v2020 = vadd.f32 0.0, %v2019
    %v2021 = vpop.f32.mrb[0].mxu0
    %2022 = vdwg.mxu0
    %v2024 = vsel %vm465, %v1944, 0
    %v2027 = vsel %vm465, %v2020, 0
    %2029 = vmatprep.subr.mxu0 0.0
    %2030 = vmatpush1.msra.mxu0 %v464
    %2031 = vmatprep.subr.mxu0 0.0
    %2032 = vmatpush1.msra.mxu0 0.0
    %2033 = vmatprep.subr.mxu0 0.0
    %2034 = vmatpush1.msra.mxu0 0.0
    %2035 = vmatprep.subr.mxu0 0.0
    %2036 = vmatpush1.msra.mxu0 0.0
    %2037 = vmatprep.subr.mxu0 0.0
    %2038 = vmatpush1.msra.mxu0 0.0
    %2039 = vmatprep.subr.mxu0 0.0
    %2040 = vmatpush1.msra.mxu0 0.0
    %2041 = vmatprep.subr.mxu0 0.0
    %2042 = vmatpush1.msra.mxu0 0.0
    %2043 = vmatprep.subr.mxu0 0.0
    %2044 = vmatpush1.msra.mxu0 0.0
    %2045 = vmatprep.subr.mxu0 0.0
    %2046 = vmatpush1.msra.mxu0 0.0
    %2047 = vmatprep.subr.mxu0 0.0
    %2048 = vmatpush1.msra.mxu0 0.0
    %2049 = vmatprep.subr.mxu0 0.0
    %2050 = vmatpush1.msra.mxu0 0.0
    %2051 = vmatprep.subr.mxu0 0.0
    %2052 = vmatpush1.msra.mxu0 0.0
    %2053 = vmatprep.subr.mxu0 0.0
    %2054 = vmatpush1.msra.mxu0 0.0
    %2055 = vmatprep.subr.mxu0 0.0
    %2056 = vmatpush1.msra.mxu0 0.0
    %2057 = vmatprep.subr.mxu0 0.0
    %2058 = vmatpush1.msra.mxu0 0.0
    %2059 = vmatprep.subr.mxu0 0.0
    %2060 = vmatpush1.msra.mxu0 0.0
    %2061 = vmatprep.subr.mxu0 0.0
    %2062 = vmatpush1.msra.mxu0 0.0
    %2063 = vmatprep.subr.mxu0 0.0
    %2064 = vmatpush1.msra.mxu0 0.0
    %2065 = vmatprep.subr.mxu0 0.0
    %2066 = vmatpush1.msra.mxu0 0.0
    %2067 = vmatprep.subr.mxu0 0.0
    %2068 = vmatpush1.msra.mxu0 0.0
    %2069 = vmatprep.subr.mxu0 0.0
    %2070 = vmatpush1.msra.mxu0 0.0
    %2071 = vmatprep.subr.mxu0 0.0
    %2072 = vmatpush1.msra.mxu0 0.0
    %2073 = vmatprep.subr.mxu0 0.0
    %2074 = vmatpush1.msra.mxu0 0.0
    %2075 = vmatprep.subr.mxu0 0.0
    %2076 = vmatpush1.msra.mxu0 0.0
    %2077 = vmatprep.subr.mxu0 0.0
    %2078 = vmatpush1.msra.mxu0 0.0
    %2079 = vmatprep.subr.mxu0 0.0
    %2080 = vmatpush1.msra.mxu0 0.0
    %2081 = vmatprep.subr.mxu0 0.0
    %2082 = vmatpush1.msra.mxu0 0.0
    %2083 = vmatprep.subr.mxu0 0.0
    %2084 = vmatpush1.msra.mxu0 0.0
    %2085 = vmatprep.subr.mxu0 0.0
    %2086 = vmatpush1.msra.mxu0 0.0
    %2087 = vmatprep.subr.mxu0 0.0
    %2088 = vmatpush1.msra.mxu0 0.0
    %2089 = vmatprep.subr.mxu0 0.0
    %2090 = vmatpush1.msra.mxu0 0.0
    %2091 = vmatprep.subr.mxu0 0.0
    %2092 = vmatpush1.msra.mxu0 0.0
    %2093 = vmatprep.mubr.f32.mxu0 0.0
    %2094 = vmatmul.mubr.f32.gmra.mrb[0].mxu0 %v2024
    %v2095 = vpop.f32.mrb[0].mxu0
    %v2096 = vadd.f32 0.0, %v2095
    %v2097 = vpop.f32.mrb[0].mxu0
    %2098 = vmatprep.mubr.f32.mxu0 0.0
    %2099 = vmatmul.mubr.f32.gmra.mrb[0].mxu0 %v2027
    %v2100 = vpop.f32.mrb[0].mxu0
    %v2101 = vadd.f32 0.0, %v2100
    %v2102 = vpop.f32.mrb[0].mxu0
    %2103 = vdwg.mxu0
    %v2104 = vadd.f32 %v1691, %v2096
    %v2105 = vadd.f32 %v1692, %v2101
    %v2106 = vld [vmem:[#allocation13] sm:$0x1]
    %v2108 = vlaneseq
    %v2109 = vshrl.u32 %v2108, 7
    %v2110 = vsub.s32 0, %v2109
    %v2111 = vrot.slane %v2106, %v2110
    %v2113 = vadd.f32 %v2104, %v2111
    %v2114 = vadd.f32 %v2105, %v2111
    %v2115 = vadd.f32 %v172, %v2113
    %v2116 = vadd.f32 %v173, %v2114
    %v2117 = vld [vmem:[#allocation14] sm:$0x1]
    %v2118 = vld [vmem:[%s14] sm:$0x1]
    %v2119 = vsel %vm193, %v2115, 0.0
    %2120 = vadd.xlane.f32.xlu0 %v2119
    %v2121 = vpop.xlane.xlu0 %2120
    %v2122 = vsel %vm193, %v2116, 0.0
    %2123 = vadd.xlane.f32.xlu0 %v2122
    %v2124 = vpop.xlane.xlu0 %2123
    %v2125 = vrcp.pop 32.0
    %v2126 = vmul.f32 %v2121, %v2125
    %v2127 = vmul.f32 %v2124, %v2125
    %v2128 = vsub.f32 %v2115, %v2126
    %v2129 = vsub.f32 %v2116, %v2127
    %v2130 = vmul.f32 %v2128, %v2128
    %v2131 = vmul.f32 %v2129, %v2129
    %v2132 = vsel %vm193, %v2130, 0.0
    %2133 = vadd.xlane.f32.xlu0 %v2132
    %v2134 = vpop.xlane.xlu0 %2133
    %v2135 = vsel %vm193, %v2131, 0.0
    %2136 = vadd.xlane.f32.xlu0 %v2135
    %v2137 = vpop.xlane.xlu0 %2136
    %v2138 = vmul.f32 %v2134, %v2125
    %v2139 = vmul.f32 %v2137, %v2125
    %v2140 = vadd.f32 %v2138, 1e-05
    %v2141 = vadd.f32 %v2139, 1e-05
    %v2142 = vrsqrt.pop %v2140
    %v2143 = vrsqrt.pop %v2141
    %v2144 = vmul.f32 %v2128, %v2142
    %v2145 = vmul.f32 %v2129, %v2143
    %v2147 = vlaneseq
    %v2148 = vshrl.u32 %v2147, 7
    %v2149 = vsub.s32 0, %v2148
    %v2150 = vrot.slane %v2117, %v2149
    %v2152 = vmul.f32 %v2144, %v2150
    %v2153 = vmul.f32 %v2145, %v2150
    %v2155 = vlaneseq
    %v2156 = vshrl.u32 %v2155, 7
    %v2157 = vsub.s32 0, %v2156
    %v2158 = vrot.slane %v2118, %v2157
    %v2160 = vadd.f32 %v2152, %v2158
    %v2161 = vadd.f32 %v2153, %v2158
    %v2162 = vld [vmem:[%s15] sm:$0xff]
    %v2163 = vld [vmem:[%s15 + $0x8] sm:$0xff]
    %v2164 = vld [vmem:[%s15 + $0x10] sm:$0xff]
    %v2165 = vld [vmem:[%s15 + $0x18] sm:$0xff]
    %v2166 = vld [vmem:[%s16] sm:$0x1]
    %v2168 = vlaneseq
    %v2169 = vshrl.u32 %v2168, 7
    %v2170 = vsub.s32 0, %v2169
    %v2171 = vrot.slane %v2166, %v2170
    %v2174 = vsel %vm193, %v2160, 0
    %v2177 = vsel %vm193, %v2161, 0
    %2179 = vmatprep.subr.mxu0 0.0
    %2180 = vmatpush1.msra.mxu0 %v2162
    %2181 = vmatprep.subr.mxu0 0.0
    %2182 = vmatpush1.msra.mxu0 %v2163
    %2183 = vmatprep.subr.mxu0 0.0
    %2184 = vmatpush1.msra.mxu0 %v2164
    %2185 = vmatprep.subr.mxu0 0.0
    %2186 = vmatpush1.msra.mxu0 %v2165
    %2187 = vmatprep.subr.mxu0 0.0
    %2188 = vmatpush1.msra.mxu0 0.0
    %2189 = vmatprep.subr.mxu0 0.0
    %2190 = vmatpush1.msra.mxu0 0.0
    %2191 = vmatprep.subr.mxu0 0.0
    %2192 = vmatpush1.msra.mxu0 0.0
    %2193 = vmatprep.subr.mxu0 0.0
    %2194 = vmatpush1.msra.mxu0 0.0
    %2195 = vmatprep.subr.mxu0 0.0
    %2196 = vmatpush1.msra.mxu0 0.0
    %2197 = vmatprep.subr.mxu0 0.0
    %2198 = vmatpush1.msra.mxu0 0.0
    %2199 = vmatprep.subr.mxu0 0.0
    %2200 = vmatpush1.msra.mxu0 0.0
    %2201 = vmatprep.subr.mxu0 0.0
    %2202 = vmatpush1.msra.mxu0 0.0
    %2203 = vmatprep.subr.mxu0 0.0
    %2204 = vmatpush1.msra.mxu0 0.0
    %2205 = vmatprep.subr.mxu0 0.0
    %2206 = vmatpush1.msra.mxu0 0.0
    %2207 = vmatprep.subr.mxu0 0.0
    %2208 = vmatpush1.msra.mxu0 0.0
    %2209 = vmatprep.subr.mxu0 0.0
    %2210 = vmatpush1.msra.mxu0 0.0
    %2211 = vmatprep.subr.mxu0 0.0
    %2212 = vmatpush1.msra.mxu0 0.0
    %2213 = vmatprep.subr.mxu0 0.0
    %2214 = vmatpush1.msra.mxu0 0.0
    %2215 = vmatprep.subr.mxu0 0.0
    %2216 = vmatpush1.msra.mxu0 0.0
    %2217 = vmatprep.subr.mxu0 0.0
    %2218 = vmatpush1.msra.mxu0 0.0
    %2219 = vmatprep.subr.mxu0 0.0
    %2220 = vmatpush1.msra.mxu0 0.0
    %2221 = vmatprep.subr.mxu0 0.0
    %2222 = vmatpush1.msra.mxu0 0.0
    %2223 = vmatprep.subr.mxu0 0.0
    %2224 = vmatpush1.msra.mxu0 0.0
    %2225 = vmatprep.subr.mxu0 0.0
    %2226 = vmatpush1.msra.mxu0 0.0
    %2227 = vmatprep.subr.mxu0 0.0
    %2228 = vmatpush1.msra.mxu0 0.0
    %2229 = vmatprep.subr.mxu0 0.0
    %2230 = vmatpush1.msra.mxu0 0.0
    %2231 = vmatprep.subr.mxu0 0.0
    %2232 = vmatpush1.msra.mxu0 0.0
    %2233 = vmatprep.subr.mxu0 0.0
    %2234 = vmatpush1.msra.mxu0 0.0
    %2235 = vmatprep.subr.mxu0 0.0
    %2236 = vmatpush1.msra.mxu0 0.0
    %2237 = vmatprep.subr.mxu0 0.0
    %2238 = vmatpush1.msra.mxu0 0.0
    %2239 = vmatprep.subr.mxu0 0.0
    %2240 = vmatpush1.msra.mxu0 0.0
    %2241 = vmatprep.subr.mxu0 0.0
    %2242 = vmatpush1.msra.mxu0 0.0
    %2243 = vmatprep.mubr.f32.mxu0 0.0
    %2244 = vmatmul.mubr.f32.gmra.mrb[0].mxu0 %v2174
    %v2245 = vpop.f32.mrb[0].mxu0
    %v2246 = vadd.f32 %v2171, %v2245
    %v2247 = vpop.f32.mrb[0].mxu0
    %2248 = vmatprep.mubr.f32.mxu0 0.0
    %2249 = vmatmul.mubr.f32.gmra.mrb[0].mxu0 %v2177
    %v2250 = vpop.f32.mrb[0].mxu0
    %v2251 = vadd.f32 %v2171, %v2250
    %v2252 = vpop.f32.mrb[0].mxu0
    %2253 = vdwg.mxu0
    %v2254 = vmax.f32 %v2246, 0.0
    %v2255 = vmax.f32 %v2251, 0.0
    %v2256 = vld [vmem:[%s17] sm:$0xff]
    %v2257 = vld [vmem:[%s17 + $0x8] sm:$0xff]
    %v2258 = vld [vmem:[%s17 + $0x10] sm:$0xff]
    %v2259 = vld [vmem:[%s17 + $0x18] sm:$0xff]
    %v2260 = vld [vmem:[%s17 + $0x20] sm:$0xff]
    %v2261 = vld [vmem:[%s17 + $0x28] sm:$0xff]
    %v2262 = vld [vmem:[%s17 + $0x30] sm:$0xff]
    %v2263 = vld [vmem:[%s17 + $0x38] sm:$0xff]
    %v2264 = vld [vmem:[%s18] sm:$0x1]
    %v2266 = vlaneseq
    %v2267 = vshrl.u32 %v2266, 7
    %v2268 = vsub.s32 0, %v2267
    %v2269 = vrot.slane %v2264, %v2268
    %vm2271 = vcmask 523264
    %v2273 = vsel %vm2271, %v2254, 0
    %v2276 = vsel %vm2271, %v2255, 0
    %2278 = vmatprep.subr.mxu0 0.0
    %2279 = vmatpush1.msra.mxu0 %v2256
    %2280 = vmatprep.subr.mxu0 0.0
    %2281 = vmatpush1.msra.mxu0 %v2257
    %2282 = vmatprep.subr.mxu0 0.0
    %2283 = vmatpush1.msra.mxu0 %v2258
    %2284 = vmatprep.subr.mxu0 0.0
    %2285 = vmatpush1.msra.mxu0 %v2259
    %2286 = vmatprep.subr.mxu0 0.0
    %2287 = vmatpush1.msra.mxu0 %v2260
    %2288 = vmatprep.subr.mxu0 0.0
    %2289 = vmatpush1.msra.mxu0 %v2261
    %2290 = vmatprep.subr.mxu0 0.0
    %2291 = vmatpush1.msra.mxu0 %v2262
    %2292 = vmatprep.subr.mxu0 0.0
    %2293 = vmatpush1.msra.mxu0 %v2263
    %2294 = vmatprep.subr.mxu0 0.0
    %2295 = vmatpush1.msra.mxu0 0.0
    %2296 = vmatprep.subr.mxu0 0.0
    %2297 = vmatpush1.msra.mxu0 0.0
    %2298 = vmatprep.subr.mxu0 0.0
    %2299 = vmatpush1.msra.mxu0 0.0
    %2300 = vmatprep.subr.mxu0 0.0
    %2301 = vmatpush1.msra.mxu0 0.0
    %2302 = vmatprep.subr.mxu0 0.0
    %2303 = vmatpush1.msra.mxu0 0.0
    %2304 = vmatprep.subr.mxu0 0.0
    %2305 = vmatpush1.msra.mxu0 0.0
    %2306 = vmatprep.subr.mxu0 0.0
    %2307 = vmatpush1.msra.mxu0 0.0
    %2308 = vmatprep.subr.mxu0 0.0
    %2309 = vmatpush1.msra.mxu0 0.0
    %2310 = vmatprep.subr.mxu0 0.0
    %2311 = vmatpush1.msra.mxu0 0.0
    %2312 = vmatprep.subr.mxu0 0.0
    %2313 = vmatpush1.msra.mxu0 0.0
    %2314 = vmatprep.subr.mxu0 0.0
    %2315 = vmatpush1.msra.mxu0 0.0
    %2316 = vmatprep.subr.mxu0 0.0
    %2317 = vmatpush1.msra.mxu0 0.0
    %2318 = vmatprep.subr.mxu0 0.0
    %2319 = vmatpush1.msra.mxu0 0.0
    %2320 = vmatprep.subr.mxu0 0.0
    %2321 = vmatpush1.msra.mxu0 0.0
    %2322 = vmatprep.subr.mxu0 0.0
    %2323 = vmatpush1.msra.mxu0 0.0
    %2324 = vmatprep.subr.mxu0 0.0
    %2325 = vmatpush1.msra.mxu0 0.0
    %2326 = vmatprep.subr.mxu0 0.0
    %2327 = vmatpush1.msra.mxu0 0.0
    %2328 = vmatprep.subr.mxu0 0.0
    %2329 = vmatpush1.msra.mxu0 0.0
    %2330 = vmatprep.subr.mxu0 0.0
    %2331 = vmatpush1.msra.mxu0 0.0
    %2332 = vmatprep.subr.mxu0 0.0
    %2333 = vmatpush1.msra.mxu0 0.0
    %2334 = vmatprep.subr.mxu0 0.0
    %2335 = vmatpush1.msra.mxu0 0.0
    %2336 = vmatprep.subr.mxu0 0.0
    %2337 = vmatpush1.msra.mxu0 0.0
    %2338 = vmatprep.subr.mxu0 0.0
    %2339 = vmatpush1.msra.mxu0 0.0
    %2340 = vmatprep.subr.mxu0 0.0
    %2341 = vmatpush1.msra.mxu0 0.0
    %2342 = vmatprep.mubr.f32.mxu0 0.0
    %2343 = vmatmul.mubr.f32.gmra.mrb[0].mxu0 %v2273
    %v2344 = vpop.f32.mrb[0].mxu0
    %v2345 = vadd.f32 %v2269, %v2344
    %v2346 = vpop.f32.mrb[0].mxu0
    %2347 = vmatprep.mubr.f32.mxu0 0.0
    %2348 = vmatmul.mubr.f32.gmra.mrb[0].mxu0 %v2276
    %v2349 = vpop.f32.mrb[0].mxu0
    %v2350 = vadd.f32 %v2269, %v2349
    %v2351 = vpop.f32.mrb[0].mxu0
    %2352 = vdwg.mxu0
    %v2353 = vadd.f32 %v2160, %v2345
    %v2354 = vadd.f32 %v2161, %v2350
    %v2355 = vld [vmem:[%s19] sm:$0x1]
    %v2356 = vld [vmem:[%s20] sm:$0x1]
    %v2357 = vsel %vm193, %v2353, 0.0
    %2358 = vadd.xlane.f32.xlu0 %v2357
    %v2359 = vpop.xlane.xlu0 %2358
    %v2360 = vsel %vm193, %v2354, 0.0
    %2361 = vadd.xlane.f32.xlu0 %v2360
    %v2362 = vpop.xlane.xlu0 %2361
    %v2363 = vmul.f32 %v2359, %v2125
    %v2364 = vmul.f32 %v2362, %v2125
    %v2365 = vsub.f32 %v2353, %v2363
    %v2366 = vsub.f32 %v2354, %v2364
    %v2367 = vmul.f32 %v2365, %v2365
    %v2368 = vmul.f32 %v2366, %v2366
    %v2369 = vsel %vm193, %v2367, 0.0
    %2370 = vadd.xlane.f32.xlu0 %v2369
    %v2371 = vpop.xlane.xlu0 %2370
    %v2372 = vsel %vm193, %v2368, 0.0
    %2373 = vadd.xlane.f32.xlu0 %v2372
    %v2374 = vpop.xlane.xlu0 %2373
    %v2375 = vmul.f32 %v2371, %v2125
    %v2376 = vmul.f32 %v2374, %v2125
    %v2377 = vadd.f32 %v2375, 1e-05
    %v2378 = vadd.f32 %v2376, 1e-05
    %v2379 = vrsqrt.pop %v2377
    %v2380 = vrsqrt.pop %v2378
    %v2381 = vmul.f32 %v2365, %v2379
    %v2382 = vmul.f32 %v2366, %v2380
    %v2384 = vlaneseq
    %v2385 = vshrl.u32 %v2384, 7
    %v2386 = vsub.s32 0, %v2385
    %v2387 = vrot.slane %v2355, %v2386
    %v2389 = vmul.f32 %v2381, %v2387
    %v2390 = vmul.f32 %v2382, %v2387
    %v2392 = vlaneseq
    %v2393 = vshrl.u32 %v2392, 7
    %v2394 = vsub.s32 0, %v2393
    %v2395 = vrot.slane %v2356, %v2394
    %v2397 = vadd.f32 %v2389, %v2395
    %v2398 = vadd.f32 %v2390, %v2395
    %2400 = vset.pattern.permute.xlu0 0
    %2401 = vperm.xlu0 %2400, %v178
    %v2402 = vpop.permute.xlu0 %2401
    %2405 = vset.pattern.permute.xlu0 0
    %2406 = vperm.xlu0 %2405, %v179
    %v2407 = vpop.permute.xlu0 %2406
    %v2409 = vmul.f32 %v2397, %v2402
    %v2410 = vmul.f32 %v2398, %v2407
    %2411 = vst.msk [vmem:[#allocation16] sm:$0xff] %vm193, %v2409
    %2412 = vst.msk [vmem:[#allocation16 + $0x8] sm:$0xff] %vm193, %v2410
    // Predicated region
    $region118: #{tpu_custom_call.1} parent=1 // pred_check
      _
    $region119: #{tpu_custom_call.1} parent=1 // pred_check_branch
      %2414 = sbr.rel (0) target = $region121
    $region120: #{tpu_custom_call.1} parent=1 // pred_region
      %s2416 = ssub.s32 256, 256
      %2417 = vsyncadd [#allocation4], %s2416
      %s2418 = sshll.u32 [#allocation16], 4
      %s2419 = int_to_ptr.vmem [resolvable:$true] %s2418
      %2424 = dma.vmem_to_hbm [thread:$0]  %s2419, 256, %s21, [#allocation4], 128, 128, 8
    $region121: #{tpu_custom_call.1} parent=1 // pred_fallthru
      _
    // Predicated region
    $region122: #{tpu_custom_call.1} parent=1 // pred_check
      _
    $region123: #{tpu_custom_call.1} parent=1 // pred_check_branch
      %2426 = sbr.rel (0) target = $region125
    $region124: #{tpu_custom_call.1} parent=1 // pred_region
      %2427 = dma.done [#allocation4], 256
    $region125: #{tpu_custom_call.1} parent=1 // pred_fallthru
      _
    %2428 = vsyncpa [#allocation3], 1
    %2429 = vsyncpa [#allocation6], 1
    %2430 = vsyncpa [#allocation9], 1
    %2431 = vsyncpa [#allocation12], 1
    %2432 = vsyncpa [#allocation15], 1
    %2433 = vsyncpa [#allocation4], 1

</llo_original>
